<compile_context>
chip_gen: v5e
topology: v5e:2x2
jax: 0.10.0
libtpu: 0.0.40
codegen_flags: <defaults>
</compile_context>

<pallas_src>
import functools

import jax
import jax.numpy as jnp
from jax import lax
from jax.experimental import pallas as pl
from jax.experimental.pallas import tpu as pltpu

LN_EPS = 1e-5  # PyTorch nn.LayerNorm default


def _round_up(x, m):
    return (x + m - 1) // m * m


def _layernorm(x, gamma, beta):
    mu = jnp.mean(x, axis=-1, keepdims=True)
    var = jnp.mean((x - mu) ** 2, axis=-1, keepdims=True)  # population variance (torch LN)
    return (x - mu) * lax.rsqrt(var + LN_EPS) * gamma + beta


def _layernorm_masked(x, gamma, beta, n_valid, valid):
    """LayerNorm over the first `n_valid` lanes of a lane-padded block (padded lanes are 0)."""
    xz = jnp.where(valid, x, 0.0)
    mu = jnp.sum(xz, axis=-1, keepdims=True) / n_valid
    d = jnp.where(valid, x - mu, 0.0)
    var = jnp.sum(d * d, axis=-1, keepdims=True) / n_valid
    return (x - mu) * lax.rsqrt(var + LN_EPS) * gamma + beta


def saturn_encode_kernel(x_ref, wp_ref, cln_ref, w1_ref, p1_ref, w2_ref, p2_ref,
                         enc_in_ref, enc_ref, acc_ref, *, embed_dim):
    k = pl.program_id(1)

    @pl.when(k == 0)
    def _():
        acc_ref[...] = jnp.zeros_like(acc_ref)

    # ---- dominant matmul, K-tiled over the species' genes ----
    # exp() of the raw p_weights block runs on the EUP (free VLIW slot under the MXU).
    # The NT dot_general contracts the gene axis of BOTH operands, so the weight stays in
    # its native (num_cl, genes) layout — no transpose in the wrapper or the kernel.
    wt = jnp.exp(wp_ref[...]).astype(jnp.bfloat16)                 # (C, tk) bf16
    acc_ref[...] += lax.dot_general(
        x_ref[...], wt, dimension_numbers=(((1,), (1,)), ((), ())),
        preferred_element_type=jnp.float32)                        # (tb, C) f32 accumulate

    @pl.when(k == pl.num_programs(1) - 1)
    def _():
        # ---- pre-encoder epilogue: cl_layer_norm + ReLU (Dropout(p=0 / eval) = identity) ----
        cln = cln_ref[...]                                         # (2, C): gamma, beta
        x = jnp.maximum(_layernorm(acc_ref[...], cln[0:1, :], cln[1:2, :]), 0.0)
        enc_in_ref[...] = x.astype(enc_in_ref.dtype)

        # ---- full_block 1: Linear -> LayerNorm -> ReLU ----
        p1 = p1_ref[...]                                           # (3, H): b1, gamma1, beta1
        h = jnp.dot(x.astype(jnp.bfloat16), w1_ref[...],
                    preferred_element_type=jnp.float32) + p1[0:1, :]
        h = jnp.maximum(_layernorm(h, p1[1:2, :], p1[2:3, :]), 0.0)

        # ---- full_block 2: Linear -> LayerNorm -> ReLU (embed dim lane-padded to 128) ----
        # NOTE: correctness of padded lanes relies on gamma2/beta2 being ZERO-padded
        # (padded lanes become exactly 0 and are sliced away in the wrapper).
        p2 = p2_ref[...]                                           # (3, E_pad): b2, gamma2, beta2
        z = jnp.dot(h.astype(jnp.bfloat16), w2_ref[...],
                    preferred_element_type=jnp.float32) + p2[0:1, :]
        valid = lax.broadcasted_iota(jnp.int32, z.shape, 1) < embed_dim
        z = _layernorm_masked(z, p2[1:2, :], p2[2:3, :], float(embed_dim), valid)
        enc_ref[...] = jnp.maximum(z, 0.0).astype(enc_ref.dtype)


def _pick_tile_b(B):
    # Prefer a tile that divides B, is <= 256, and leaves >= 2 grid steps on the
    # "parallel" batch axis so both v7x TensorCores get work (v5e/v6e have 1 TC -> free).
    for t in (256, 128, 64, 32, 16, 8):
        if B % t == 0 and t <= B // 2:
            return t
    return B


def _vmem_budget_bytes(tile_b, tk, C, H, E_pad):
    expr = 2 * tile_b * tk * 2                                       # bf16 expr, double-buffered
    wp = 2 * C * tk * 4                                              # raw f32 weight blocks
    consts = 2 * (C * H * 2 + H * E_pad * 2 + 2 * C * 4 + 3 * H * 4 + 3 * E_pad * 4)
    outs = 2 * (tile_b * C * 4 + tile_b * E_pad * 4)
    acc = tile_b * C * 4
    return expr + wp + consts + outs + acc


def saturn_encode(inp, species, params, species_to_gene_idx, num_genes,
                  *, tile_b=None, tile_k=None,
                  out_dtype=jnp.float32, enc_in_dtype=jnp.float32):
    """inp: (B, n_species_genes) raw expression -> (encoder_input (B, C), encoded (B, E))."""
    B, n_sp = inp.shape
    p_weights, cl_g, cl_b, w1, b1, g1, be1, w2, b2, g2, be2 = params
    C = p_weights.shape[0]        # num_cl (macrogenes)
    H = w1.shape[1]               # hidden_dim
    E = w2.shape[1]               # embed_dim
    E_pad = _round_up(E, 128)     # lane-dense output; LN stats masked to E inside kernel

    s0, s1 = species_to_gene_idx[species]
    assert s1 - s0 == n_sp and s1 <= num_genes

    # No gene scatter: genes outside this species' slice would be log1p(0)=0 and contribute
    # nothing, so we stream log1p(inp) (bf16 = half the DMA bytes; MXU operand is bf16 anyway)
    # against the species-sliced weight columns.
    expr = jnp.log1p(inp.astype(jnp.float32)).astype(jnp.bfloat16)   # (B, n_sp)
    wp = p_weights[:, s0:s1]                                         # (C, n_sp) raw f32; exp() fused in-kernel

    if tile_k is None:
        tile_k = min(2048, _round_up(n_sp, 128))
    k_pad = _round_up(n_sp, tile_k)
    if k_pad != n_sp:             # padded gene columns: expr pad = 0  =>  0 * exp(0) = 0 contribution
        expr = jnp.pad(expr, ((0, 0), (0, k_pad - n_sp)))
        wp = jnp.pad(wp, ((0, 0), (0, k_pad - n_sp)))

    if tile_b is None:
        tile_b = _pick_tile_b(B)
    assert B % tile_b == 0

    pad_e = E_pad - E
    w1b = w1.astype(jnp.bfloat16)                                    # (C, H)
    w2p = jnp.pad(w2, ((0, 0), (0, pad_e))).astype(jnp.bfloat16)     # (H, E_pad)
    cln = jnp.stack([cl_g, cl_b]).astype(jnp.float32)                # (2, C)
    p1 = jnp.stack([b1, g1, be1]).astype(jnp.float32)                # (3, H)
    p2 = jnp.pad(jnp.stack([b2, g2, be2]),                           # (3, E_pad); must stay zero-padded
                 ((0, 0), (0, pad_e))).astype(jnp.float32)

    grid = (B // tile_b, k_pad // tile_k)
    const = lambda i, k: (0, 0)
    # TODO(synk): on VMEM-tight v7x configs, single-buffer the constant-index param blocks
    #             (pipeline_mode=pl.Buffered(1)); they never change across grid steps.
    vmem_limit = int(min(64 << 20, max(32 << 20,
                                       2 * _vmem_budget_bytes(tile_b, tile_k, C, H, E_pad))))

    kernel = functools.partial(saturn_encode_kernel, embed_dim=E)
    enc_in, enc_pad = pl.pallas_call(
        kernel,
        out_shape=(jax.ShapeDtypeStruct((B, C), enc_in_dtype),
                   jax.ShapeDtypeStruct((B, E_pad), out_dtype)),
        grid_spec=pltpu.PrefetchScalarGridSpec(
            num_scalar_prefetch=0,
            grid=grid,
            in_specs=[
                pl.BlockSpec((tile_b, tile_k), lambda i, k: (i, k)),  # log1p(expr), bf16 stream
                pl.BlockSpec((C, tile_k), lambda i, k: (0, k)),       # raw p_weights species slice (f32)
                pl.BlockSpec((2, C), const),                          # cl LN gamma / beta
                pl.BlockSpec((C, H), const),                          # W1 (bf16)
                pl.BlockSpec((3, H), const),                          # b1 / LN1 gamma / beta
                pl.BlockSpec((H, E_pad), const),                      # W2 padded (bf16)
                pl.BlockSpec((3, E_pad), const),                      # b2 / LN2 gamma / beta (zero-padded)
            ],
            out_specs=(pl.BlockSpec((tile_b, C), lambda i, k: (i, 0)),
                       pl.BlockSpec((tile_b, E_pad), lambda i, k: (i, 0))),
            scratch_shapes=[pltpu.VMEM((tile_b, C), jnp.float32)],    # f32 macrogene accumulator
        ),
        compiler_params=pltpu.CompilerParams(
            dimension_semantics=("parallel", "arbitrary"),
            vmem_limit_bytes=vmem_limit),
    )(expr, wp, cln, w1b, p1, w2p, p2)

    return enc_in, enc_pad[:, :E]


def saturn_encode_ref(inp, species, params, species_to_gene_idx, num_genes,
                      matmul_dtype=jnp.float32):
    """Pure-JAX reference with the original module semantics (scatter into full gene vector).
    matmul_dtype=bfloat16 mirrors the kernel's MXU operand casts."""
    p_weights, cl_g, cl_b, w1, b1, g1, be1, w2, b2, g2, be2 = params
    B = inp.shape[0]
    s0, s1 = species_to_gene_idx[species]
    expr = jnp.zeros((B, num_genes), jnp.float32).at[:, s0:s1].set(inp)
    expr = jnp.log1p(expr)
    md = matmul_dtype
    dot = lambda a, b: jnp.dot(a.astype(md), b.astype(md),
                               preferred_element_type=jnp.float32)
    x = jnp.maximum(_layernorm(dot(expr, jnp.exp(p_weights).T), cl_g, cl_b), 0.0)
    h = jnp.maximum(_layernorm(dot(x, w1) + b1, g1, be1), 0.0)
    z = jnp.maximum(_layernorm(dot(h, w2) + b2, g2, be2), 0.0)
    return x, z


def init_params(key, num_genes, num_cl, hidden_dim, embed_dim):
    """Deterministic synthetic parameters (shapes match the PyTorch module)."""
    ks = jax.random.split(key, 5)
    # p_weights = log(gene_scores.T), so exp(p_weights) is positive (log-normal-ish spread)
    p_weights = jax.random.normal(ks[0], (num_cl, num_genes), jnp.float32) * 1.0 - 3.0
    cl_g = jnp.ones((num_cl,), jnp.float32)
    cl_b = jnp.zeros((num_cl,), jnp.float32)
    w1 = jax.random.normal(ks[1], (num_cl, hidden_dim), jnp.float32) * 0.02
    b1 = jax.random.normal(ks[2], (hidden_dim,), jnp.float32) * 0.01
    g1 = jnp.ones((hidden_dim,), jnp.float32)
    be1 = jnp.zeros((hidden_dim,), jnp.float32)
    w2 = jax.random.normal(ks[3], (hidden_dim, embed_dim), jnp.float32) * 0.05
    b2 = jax.random.normal(ks[4], (embed_dim,), jnp.float32) * 0.01
    g2 = jnp.ones((embed_dim,), jnp.float32)
    be2 = jnp.zeros((embed_dim,), jnp.float32)
    return (p_weights, cl_g, cl_b, w1, b1, g1, be1, w2, b2, g2, be2)


if __name__ == "__main__":
    # Small shapes consistent with the module: hidden_dim=128, embed_dim=10 (module defaults),
    # 3 species x 128 genes each, 256 macrogene clusters, batch 64.
    B = 64
    NUM_CL = 256
    HIDDEN = 128
    EMBED = 10
    SPECIES_TO_GENE_IDX = {"human": (0, 128), "mouse": (128, 256), "zebrafish": (256, 384)}
    NUM_GENES = max(v[1] for v in SPECIES_TO_GENE_IDX.values())
    SPECIES = "human"
    n_sp = SPECIES_TO_GENE_IDX[SPECIES][1] - SPECIES_TO_GENE_IDX[SPECIES][0]

    key = jax.random.PRNGKey(0)
    kx, kp = jax.random.split(key)
    inp = jax.random.uniform(kx, (B, n_sp), jnp.float32, minval=0.0, maxval=5.0)  # raw counts
    params = init_params(kp, NUM_GENES, NUM_CL, HIDDEN, EMBED)

    enc_in, encoded = saturn_encode(inp, SPECIES, params, SPECIES_TO_GENE_IDX, NUM_GENES)
    enc_in = jax.block_until_ready(enc_in)
    encoded = jax.block_until_ready(encoded)
    assert enc_in.shape == (B, NUM_CL) and encoded.shape == (B, EMBED)

    # Tight check against a reference that mirrors the kernel numerics (bf16 MXU operands).
    ref_in_bf, ref_enc_bf = saturn_encode_ref(inp, SPECIES, params, SPECIES_TO_GENE_IDX,
                                              NUM_GENES, matmul_dtype=jnp.bfloat16)
    assert jnp.allclose(enc_in, ref_in_bf, rtol=5e-3, atol=5e-3)
    assert jnp.allclose(encoded, ref_enc_bf, rtol=5e-3, atol=5e-3)

    # Looser sanity check against the full-f32 (torch-semantics, scattered) reference; also
    # validates that dropping the gene scatter is mathematically equivalent.
    ref_in, ref_enc = saturn_encode_ref(inp, SPECIES, params, SPECIES_TO_GENE_IDX, NUM_GENES)
    assert jnp.allclose(enc_in, ref_in, rtol=2e-1, atol=2e-1)
    assert jnp.allclose(encoded, ref_enc, rtol=2e-1, atol=2e-1)

    print("KERNEL_OK")
</pallas_src>

<mosaic_0001>
module attributes {stable_mosaic.version = 11 : i64} {
  func.func @saturn_encode_kernel(%arg0: i32, %arg1: i32, %arg2: memref<32x128xbf16, #tpu.memory_space<vmem>>, %arg3: memref<256x128xf32, #tpu.memory_space<vmem>>, %arg4: memref<2x256xf32, #tpu.memory_space<vmem>>, %arg5: memref<256x128xbf16, #tpu.memory_space<vmem>>, %arg6: memref<3x128xf32, #tpu.memory_space<vmem>>, %arg7: memref<128x128xbf16, #tpu.memory_space<vmem>>, %arg8: memref<3x128xf32, #tpu.memory_space<vmem>>, %arg9: memref<32x256xf32, #tpu.memory_space<vmem>>, %arg10: memref<32x128xf32, #tpu.memory_space<vmem>>, %arg11: memref<32x256xf32, #tpu.memory_space<vmem>>) attributes {dimension_semantics = [#tpu.dimension_semantics<parallel>, #tpu.dimension_semantics<arbitrary>], iteration_bounds = array<i64: 2, 1>, scalar_prefetch = 0 : i64, scratch_operands = 1 : i64, tpu.core_type = #tpu.core_type<tc>, window_params = [{transform_indices = @transform_0, window_bounds = array<i64: 32, 128>}, {transform_indices = @transform_1, window_bounds = array<i64: 256, 128>}, {pipeline_mode = #tpu.pipeline_mode<synchronous>, transform_indices = @transform_2, window_bounds = array<i64: 2, 256>}, {pipeline_mode = #tpu.pipeline_mode<synchronous>, transform_indices = @transform_3, window_bounds = array<i64: 256, 128>}, {pipeline_mode = #tpu.pipeline_mode<synchronous>, transform_indices = @transform_4, window_bounds = array<i64: 3, 128>}, {pipeline_mode = #tpu.pipeline_mode<synchronous>, transform_indices = @transform_5, window_bounds = array<i64: 128, 128>}, {pipeline_mode = #tpu.pipeline_mode<synchronous>, transform_indices = @transform_6, window_bounds = array<i64: 3, 128>}, {transform_indices = @transform_7, window_bounds = array<i64: 32, 256>}, {transform_indices = @transform_8, window_bounds = array<i64: 32, 128>}]} {
    %c0_i32 = arith.constant 0 : i32
    %0 = arith.cmpi eq, %arg1, %c0_i32 : i32
    %1 = arith.extui %0 : i1 to i32
    %c0_i32_0 = arith.constant 0 : i32
    %2 = arith.cmpi ne, %1, %c0_i32_0 : i32
    scf.if %2 {
      %cst_10 = arith.constant 0.000000e+00 : f32
      %14 = vector.broadcast %cst_10 : f32 to vector<32x256xf32>
      %c0_11 = arith.constant 0 : index
      %c0_12 = arith.constant 0 : index
      %15 = vector.load %arg11[%c0_11, %c0_12] : memref<32x256xf32, #tpu.memory_space<vmem>>, vector<32x256xf32>
      tpu.vector_store %arg11[%c0_11, %c0_12], %14 {strides = array<i32>} : memref<32x256xf32, #tpu.memory_space<vmem>>, vector<32x256xf32>,
    } else {
    }
    %c0 = arith.constant 0 : index
    %c0_1 = arith.constant 0 : index
    %3 = vector.load %arg3[%c0, %c0_1] : memref<256x128xf32, #tpu.memory_space<vmem>>, vector<256x128xf32>
    %4 = math.exp %3 : vector<256x128xf32>
    %5 = arith.truncf %4 : vector<256x128xf32> to vector<256x128xbf16>
    %c0_2 = arith.constant 0 : index
    %c0_3 = arith.constant 0 : index
    %6 = vector.load %arg11[%c0_2, %c0_3] : memref<32x256xf32, #tpu.memory_space<vmem>>, vector<32x256xf32>
    %c0_4 = arith.constant 0 : index
    %c0_5 = arith.constant 0 : index
    %7 = vector.load %arg2[%c0_4, %c0_5] : memref<32x128xbf16, #tpu.memory_space<vmem>>, vector<32x128xbf16>
    %cst = arith.constant dense<0.000000e+00> : vector<32x256xf32>
    %8 = tpu.matmul %7, %5, %cst {dimension_numbers = #tpu.dot_dimension_numbers<[1], [1], [0], [0], [0, 0, 1, 0], [], []>} : vector<32x128xbf16>, vector<256x128xbf16>, vector<32x256xf32> -> vector<32x256xf32>
    %9 = arith.addf %6, %8 : vector<32x256xf32>
    %c0_6 = arith.constant 0 : index
    %c0_7 = arith.constant 0 : index
    %10 = vector.load %arg11[%c0_6, %c0_7] : memref<32x256xf32, #tpu.memory_space<vmem>>, vector<32x256xf32>
    tpu.vector_store %arg11[%c0_6, %c0_7], %9 {strides = array<i32>} : memref<32x256xf32, #tpu.memory_space<vmem>>, vector<32x256xf32>,
    %c0_i32_8 = arith.constant 0 : i32
    %11 = arith.cmpi eq, %arg1, %c0_i32_8 : i32
    %12 = arith.extui %11 : i1 to i32
    %c0_i32_9 = arith.constant 0 : i32
    %13 = arith.cmpi ne, %12, %c0_i32_9 : i32
    scf.if %13 {
      %c0_10 = arith.constant 0 : index
      %c0_11 = arith.constant 0 : index
      %14 = vector.load %arg4[%c0_10, %c0_11] : memref<2x256xf32, #tpu.memory_space<vmem>>, vector<2x256xf32>
      %c0_12 = arith.constant 0 : index
      %c0_13 = arith.constant 0 : index
      %15 = vector.load %arg11[%c0_12, %c0_13] : memref<32x256xf32, #tpu.memory_space<vmem>>, vector<32x256xf32>
      %16 = vector.extract_strided_slice %14 {offsets = [0, 0], sizes = [1, 256], strides = [1, 1]} : vector<2x256xf32> to vector<1x256xf32>
      %17 = vector.extract_strided_slice %14 {offsets = [1, 0], sizes = [1, 256], strides = [1, 1]} : vector<2x256xf32> to vector<1x256xf32>
      %cst_14 = arith.constant dense<0.000000e+00> : vector<32xf32>
      %18 = vector.multi_reduction <add>, %15, %cst_14 [1] : vector<32x256xf32> to vector<32xf32>
      %19 = vector.shape_cast %18 : vector<32xf32> to vector<32x1xf32>
      %cst_15 = arith.constant 2.560000e+02 : f32
      %20 = vector.broadcast %cst_15 : f32 to vector<32x1xf32>
      %21 = arith.divf %19, %20 : vector<32x1xf32>
      %22 = vector.broadcast %21 : vector<32x1xf32> to vector<32x256xf32>
      %23 = arith.subf %15, %22 : vector<32x256xf32>
      %24 = arith.mulf %23, %23 : vector<32x256xf32>
      %cst_16 = arith.constant dense<0.000000e+00> : vector<32xf32>
      %25 = vector.multi_reduction <add>, %24, %cst_16 [1] : vector<32x256xf32> to vector<32xf32>
      %26 = vector.shape_cast %25 : vector<32xf32> to vector<32x1xf32>
      %cst_17 = arith.constant 2.560000e+02 : f32
      %27 = vector.broadcast %cst_17 : f32 to vector<32x1xf32>
      %28 = arith.divf %26, %27 : vector<32x1xf32>
      %29 = vector.broadcast %21 : vector<32x1xf32> to vector<32x256xf32>
      %30 = arith.subf %15, %29 : vector<32x256xf32>
      %cst_18 = arith.constant 9.99999974E-6 : f32
      %31 = vector.broadcast %cst_18 : f32 to vector<32x1xf32>
      %32 = arith.addf %28, %31 : vector<32x1xf32>
      %33 = math.rsqrt %32 : vector<32x1xf32>
      %34 = vector.broadcast %33 : vector<32x1xf32> to vector<32x256xf32>
      %35 = arith.mulf %30, %34 : vector<32x256xf32>
      %36 = vector.broadcast %16 : vector<1x256xf32> to vector<32x256xf32>
      %37 = arith.mulf %35, %36 : vector<32x256xf32>
      %38 = vector.broadcast %17 : vector<1x256xf32> to vector<32x256xf32>
      %39 = arith.addf %37, %38 : vector<32x256xf32>
      %cst_19 = arith.constant 0.000000e+00 : f32
      %40 = vector.broadcast %cst_19 : f32 to vector<32x256xf32>
      %41 = arith.maximumf %39, %40 : vector<32x256xf32>
      %c0_20 = arith.constant 0 : index
      %c0_21 = arith.constant 0 : index
      %42 = vector.load %arg9[%c0_20, %c0_21] : memref<32x256xf32, #tpu.memory_space<vmem>>, vector<32x256xf32>
      tpu.vector_store %arg9[%c0_20, %c0_21], %41 {strides = array<i32>} : memref<32x256xf32, #tpu.memory_space<vmem>>, vector<32x256xf32>,
      %c0_22 = arith.constant 0 : index
      %c0_23 = arith.constant 0 : index
      %43 = vector.load %arg6[%c0_22, %c0_23] : memref<3x128xf32, #tpu.memory_space<vmem>>, vector<3x128xf32>
      %44 = arith.truncf %41 : vector<32x256xf32> to vector<32x256xbf16>
      %c0_24 = arith.constant 0 : index
      %c0_25 = arith.constant 0 : index
      %45 = vector.load %arg5[%c0_24, %c0_25] : memref<256x128xbf16, #tpu.memory_space<vmem>>, vector<256x128xbf16>
      %cst_26 = arith.constant dense<0.000000e+00> : vector<32x128xf32>
      %46 = tpu.matmul %44, %45, %cst_26 {dimension_numbers = #tpu.dot_dimension_numbers<[1], [0], [0], [1], [0, 0, 1, 1], [], []>} : vector<32x256xbf16>, vector<256x128xbf16>, vector<32x128xf32> -> vector<32x128xf32>
      %47 = vector.extract_strided_slice %43 {offsets = [0, 0], sizes = [1, 128], strides = [1, 1]} : vector<3x128xf32> to vector<1x128xf32>
      %48 = vector.broadcast %47 : vector<1x128xf32> to vector<32x128xf32>
      %49 = arith.addf %46, %48 : vector<32x128xf32>
      %50 = vector.extract_strided_slice %43 {offsets = [1, 0], sizes = [1, 128], strides = [1, 1]} : vector<3x128xf32> to vector<1x128xf32>
      %51 = vector.extract_strided_slice %43 {offsets = [2, 0], sizes = [1, 128], strides = [1, 1]} : vector<3x128xf32> to vector<1x128xf32>
      %cst_27 = arith.constant dense<0.000000e+00> : vector<32xf32>
      %52 = vector.multi_reduction <add>, %49, %cst_27 [1] : vector<32x128xf32> to vector<32xf32>
      %53 = vector.shape_cast %52 : vector<32xf32> to vector<32x1xf32>
      %cst_28 = arith.constant 1.280000e+02 : f32
      %54 = vector.broadcast %cst_28 : f32 to vector<32x1xf32>
      %55 = arith.divf %53, %54 : vector<32x1xf32>
      %56 = vector.broadcast %55 : vector<32x1xf32> to vector<32x128xf32>
      %57 = arith.subf %49, %56 : vector<32x128xf32>
      %58 = arith.mulf %57, %57 : vector<32x128xf32>
      %cst_29 = arith.constant dense<0.000000e+00> : vector<32xf32>
      %59 = vector.multi_reduction <add>, %58, %cst_29 [1] : vector<32x128xf32> to vector<32xf32>
      %60 = vector.shape_cast %59 : vector<32xf32> to vector<32x1xf32>
      %cst_30 = arith.constant 1.280000e+02 : f32
      %61 = vector.broadcast %cst_30 : f32 to vector<32x1xf32>
      %62 = arith.divf %60, %61 : vector<32x1xf32>
      %63 = vector.broadcast %55 : vector<32x1xf32> to vector<32x128xf32>
      %64 = arith.subf %49, %63 : vector<32x128xf32>
      %cst_31 = arith.constant 9.99999974E-6 : f32
      %65 = vector.broadcast %cst_31 : f32 to vector<32x1xf32>
      %66 = arith.addf %62, %65 : vector<32x1xf32>
      %67 = math.rsqrt %66 : vector<32x1xf32>
      %68 = vector.broadcast %67 : vector<32x1xf32> to vector<32x128xf32>
      %69 = arith.mulf %64, %68 : vector<32x128xf32>
      %70 = vector.broadcast %50 : vector<1x128xf32> to vector<32x128xf32>
      %71 = arith.mulf %69, %70 : vector<32x128xf32>
      %72 = vector.broadcast %51 : vector<1x128xf32> to vector<32x128xf32>
      %73 = arith.addf %71, %72 : vector<32x128xf32>
      %cst_32 = arith.constant 0.000000e+00 : f32
      %74 = vector.broadcast %cst_32 : f32 to vector<32x128xf32>
      %75 = arith.maximumf %73, %74 : vector<32x128xf32>
      %c0_33 = arith.constant 0 : index
      %c0_34 = arith.constant 0 : index
      %76 = vector.load %arg8[%c0_33, %c0_34] : memref<3x128xf32, #tpu.memory_space<vmem>>, vector<3x128xf32>
      %77 = arith.truncf %75 : vector<32x128xf32> to vector<32x128xbf16>
      %c0_35 = arith.constant 0 : index
      %c0_36 = arith.constant 0 : index
      %78 = vector.load %arg7[%c0_35, %c0_36] : memref<128x128xbf16, #tpu.memory_space<vmem>>, vector<128x128xbf16>
      %cst_37 = arith.constant dense<0.000000e+00> : vector<32x128xf32>
      %79 = tpu.matmul %77, %78, %cst_37 {dimension_numbers = #tpu.dot_dimension_numbers<[1], [0], [0], [1], [0, 0, 1, 1], [], []>} : vector<32x128xbf16>, vector<128x128xbf16>, vector<32x128xf32> -> vector<32x128xf32>
      %80 = vector.extract_strided_slice %76 {offsets = [0, 0], sizes = [1, 128], strides = [1, 1]} : vector<3x128xf32> to vector<1x128xf32>
      %81 = vector.broadcast %80 : vector<1x128xf32> to vector<32x128xf32>
      %82 = arith.addf %79, %81 : vector<32x128xf32>
      %83 = tpu.iota {dimensions = array<i32: 1>} : vector<32x128xi32>
      %c10_i32 = arith.constant 10 : i32
      %84 = vector.broadcast %c10_i32 : i32 to vector<32x128xi32>
      %85 = arith.cmpi slt, %83, %84 : vector<32x128xi32>
      %86 = vector.extract_strided_slice %76 {offsets = [1, 0], sizes = [1, 128], strides = [1, 1]} : vector<3x128xf32> to vector<1x128xf32>
      %87 = vector.extract_strided_slice %76 {offsets = [2, 0], sizes = [1, 128], strides = [1, 1]} : vector<3x128xf32> to vector<1x128xf32>
      %cst_38 = arith.constant 0.000000e+00 : f32
      %88 = vector.broadcast %cst_38 : f32 to vector<32x128xf32>
      %89 = arith.select %85, %82, %88 : vector<32x128xi1>, vector<32x128xf32>
      %cst_39 = arith.constant dense<0.000000e+00> : vector<32xf32>
      %90 = vector.multi_reduction <add>, %89, %cst_39 [1] : vector<32x128xf32> to vector<32xf32>
      %91 = vector.shape_cast %90 : vector<32xf32> to vector<32x1xf32>
      %cst_40 = arith.constant 1.000000e+01 : f32
      %92 = vector.broadcast %cst_40 : f32 to vector<32x1xf32>
      %93 = arith.divf %91, %92 : vector<32x1xf32>
      %94 = vector.broadcast %93 : vector<32x1xf32> to vector<32x128xf32>
      %95 = arith.subf %82, %94 : vector<32x128xf32>
      %cst_41 = arith.constant 0.000000e+00 : f32
      %96 = vector.broadcast %cst_41 : f32 to vector<32x128xf32>
      %97 = arith.select %85, %95, %96 : vector<32x128xi1>, vector<32x128xf32>
      %98 = arith.mulf %97, %97 : vector<32x128xf32>
      %cst_42 = arith.constant dense<0.000000e+00> : vector<32xf32>
      %99 = vector.multi_reduction <add>, %98, %cst_42 [1] : vector<32x128xf32> to vector<32xf32>
      %100 = vector.shape_cast %99 : vector<32xf32> to vector<32x1xf32>
      %cst_43 = arith.constant 1.000000e+01 : f32
      %101 = vector.broadcast %cst_43 : f32 to vector<32x1xf32>
      %102 = arith.divf %100, %101 : vector<32x1xf32>
      %103 = vector.broadcast %93 : vector<32x1xf32> to vector<32x128xf32>
      %104 = arith.subf %82, %103 : vector<32x128xf32>
      %cst_44 = arith.constant 9.99999974E-6 : f32
      %105 = vector.broadcast %cst_44 : f32 to vector<32x1xf32>
      %106 = arith.addf %102, %105 : vector<32x1xf32>
      %107 = math.rsqrt %106 : vector<32x1xf32>
      %108 = vector.broadcast %107 : vector<32x1xf32> to vector<32x128xf32>
      %109 = arith.mulf %104, %108 : vector<32x128xf32>
      %110 = vector.broadcast %86 : vector<1x128xf32> to vector<32x128xf32>
      %111 = arith.mulf %109, %110 : vector<32x128xf32>
      %112 = vector.broadcast %87 : vector<1x128xf32> to vector<32x128xf32>
      %113 = arith.addf %111, %112 : vector<32x128xf32>
      %cst_45 = arith.constant 0.000000e+00 : f32
      %114 = vector.broadcast %cst_45 : f32 to vector<32x128xf32>
      %115 = arith.maximumf %113, %114 : vector<32x128xf32>
      %c0_46 = arith.constant 0 : index
      %c0_47 = arith.constant 0 : index
      %116 = vector.load %arg10[%c0_46, %c0_47] : memref<32x128xf32, #tpu.memory_space<vmem>>, vector<32x128xf32>
      tpu.vector_store %arg10[%c0_46, %c0_47], %115 {strides = array<i32>} : memref<32x128xf32, #tpu.memory_space<vmem>>, vector<32x128xf32>,
    } else {
    }
    return
  }
  func.func @transform_0(%arg0: i32, %arg1: i32) -> (i32, i32) {
    %c0_i32 = arith.constant 0 : i32
    return %arg0, %arg1 : i32, i32
  }
  func.func @transform_1(%arg0: i32, %arg1: i32) -> (i32, i32) {
    %c0_i32 = arith.constant 0 : i32
    %c0_i32_0 = arith.constant 0 : i32
    return %c0_i32, %arg1 : i32, i32
  }
  func.func @transform_2(%arg0: i32, %arg1: i32) -> (i32, i32) {
    %c0_i32 = arith.constant 0 : i32
    %c0_i32_0 = arith.constant 0 : i32
    %c0_i32_1 = arith.constant 0 : i32
    return %c0_i32, %c0_i32_0 : i32, i32
  }
  func.func @transform_3(%arg0: i32, %arg1: i32) -> (i32, i32) {
    %c0_i32 = arith.constant 0 : i32
    %c0_i32_0 = arith.constant 0 : i32
    %c0_i32_1 = arith.constant 0 : i32
    return %c0_i32, %c0_i32_0 : i32, i32
  }
  func.func @transform_4(%arg0: i32, %arg1: i32) -> (i32, i32) {
    %c0_i32 = arith.constant 0 : i32
    %c0_i32_0 = arith.constant 0 : i32
    %c0_i32_1 = arith.constant 0 : i32
    return %c0_i32, %c0_i32_0 : i32, i32
  }
  func.func @transform_5(%arg0: i32, %arg1: i32) -> (i32, i32) {
    %c0_i32 = arith.constant 0 : i32
    %c0_i32_0 = arith.constant 0 : i32
    %c0_i32_1 = arith.constant 0 : i32
    return %c0_i32, %c0_i32_0 : i32, i32
  }
  func.func @transform_6(%arg0: i32, %arg1: i32) -> (i32, i32) {
    %c0_i32 = arith.constant 0 : i32
    %c0_i32_0 = arith.constant 0 : i32
    %c0_i32_1 = arith.constant 0 : i32
    return %c0_i32, %c0_i32_0 : i32, i32
  }
  func.func @transform_7(%arg0: i32, %arg1: i32) -> (i32, i32) {
    %c0_i32 = arith.constant 0 : i32
    %c0_i32_0 = arith.constant 0 : i32
    return %arg0, %c0_i32 : i32, i32
  }
  func.func @transform_8(%arg0: i32, %arg1: i32) -> (i32, i32) {
    %c0_i32 = arith.constant 0 : i32
    %c0_i32_0 = arith.constant 0 : i32
    return %arg0, %c0_i32 : i32, i32
  }
}

</mosaic_0001>

<llo_original>
// kernel: tpu_custom_call.1
$region0: #{tpu_custom_call.1}
  #allocation0 [shape = 'u32[]', space=smem, size = 0x4, offset = 0x4, fixed_abs, tag = 'smem constant byte address 0x4 - core index']
  #allocation1 [shape = 'u32[72,128]{1,0:T(1,128)}', space=vmem, size = 0x9000, scoped, tag = 'internal scratch']
  #allocation2 [shape = 'f32[32,256]{1,0:T(8,128)}', space=vmem, size = 0x8000, scoped, tag = 'scratch operand']
  %s0 = inlined_call_operand.hbm [shape: bf16[64,128], index: 0, kind: input, shape index: {}]
  %s1 = inlined_call_operand.hbm [shape: f32[256,128], index: 1, kind: input, shape index: {}]
  %s2 = inlined_call_operand.hbm [shape: f32[2,256], index: 2, kind: input, shape index: {}]
  %s3 = inlined_call_operand.hbm [shape: bf16[256,128], index: 3, kind: input, shape index: {}]
  %s4 = inlined_call_operand.hbm [shape: f32[3,128], index: 4, kind: input, shape index: {}]
  %s5 = inlined_call_operand.hbm [shape: bf16[128,128], index: 5, kind: input, shape index: {}]
  %s6 = inlined_call_operand.vmem [shape: f32[3,128], index: 6, kind: input, shape index: {}]
  %s7 = inlined_call_operand.hbm [shape: f32[64,256], index: 7, kind: output, shape index: {0}]
  %s8 = inlined_call_operand.hbm [shape: f32[64,128], index: 8, kind: output, shape index: {1}]
  %9 = xla_tuple %s7, %s8
  %s10 = sld [smem:[#allocation0]]
  $region101: #{tpu_custom_call.1} parent=0
    _
  %s12 = ssub.s32 1, %s10
  %s13 = scalar_select 0, %s12, %s10
  $region1: #{tpu_custom_call.1} parent=0
    #allocation3 [shape = 'u8[16384]{0}', space=vmem, size = 0x4000, scoped, tag = 'input window, operand 0']
    #allocation4 [shape = 's32[2]{0}', space=sflag, size = 0x8, scoped, tag = 'scoped memory for tpu_custom_call.1']
    #allocation5 [shape = 's32[2]{0}', space=sflag, size = 0x8, scoped, tag = 'scoped memory for tpu_custom_call.1']
    #allocation6 [shape = 'u8[131072]{0}', space=vmem, size = 0x20000, scoped, tag = 'input window, operand 1, single buffered']
    #allocation7 [shape = 's32[1]{0}', space=sflag, size = 0x4, scoped, tag = 'scoped memory for tpu_custom_call.1']
    #allocation8 [shape = 'u8[2048]{0}', space=vmem, size = 0x800, scoped, tag = 'input window, operand 2, single buffered']
    #allocation9 [shape = 'u8[65536]{0}', space=vmem, size = 0x10000, scoped, tag = 'input window, operand 3, single buffered']
    #allocation10 [shape = 's32[1]{0}', space=sflag, size = 0x4, scoped, tag = 'scoped memory for tpu_custom_call.1']
    #allocation11 [shape = 'u8[2048]{0}', space=vmem, size = 0x800, scoped, tag = 'input window, operand 4, single buffered']
    #allocation12 [shape = 'u8[32768]{0}', space=vmem, size = 0x8000, scoped, tag = 'input window, operand 5, single buffered']
    #allocation13 [shape = 's32[1]{0}', space=sflag, size = 0x4, scoped, tag = 'scoped memory for tpu_custom_call.1']
    #allocation14 [shape = 'u8[65536]{0}', space=vmem, size = 0x10000, scoped, tag = 'output window, operand 0']
    #allocation15 [shape = 'u8[32768]{0}', space=vmem, size = 0x8000, scoped, tag = 'output window, operand 1']
    #allocation16 [shape = 's32[2]{0}', space=sflag, size = 0x8, scoped, tag = 'scoped memory for tpu_custom_call.1']
    %14 = vsyncpa [#allocation4], 0
    %s15 = scalar_lea.sflag [#allocation4], 1
    %16 = vsyncpa %s15, 0
    %17 = vsyncpa [#allocation7], 0
    %18 = vsyncpa [#allocation10], 0
    %19 = vsyncpa [#allocation13], 0
    %20 = vsyncpa [#allocation5], 0
    %s21 = scalar_lea.sflag [#allocation5], 1
    %22 = vsyncpa %s21, 0
    %23 = vsyncpa [#allocation16], 0
    %s24 = scalar_lea.sflag [#allocation16], 1
    %25 = vsyncpa %s24, 0
    loop: start=0, step=1, limit=4
    $region2: #{tpu_custom_call.1} parent=1 // loop_pre_header
      _
    $region3: #{tpu_custom_call.1} parent=1 // loop_header
      %s27 = sphi 0, %s31
      %p28 = scmp.ge.s32.totalorder %s27, 4
      %s34 = sphi 0, %s46
      %s35 = sphi 0, %s42
      %s36 = sphi 0, %s34
      %s37 = sphi 0, %s35
      %s38 = sphi 0, %s36
      %s39 = sphi 0, %s37
      %s51 = sphi 0, %s53
      %s54 = sphi 0, %s51
      %s55 = sphi 0, %s54
      %s71 = sphi 0, %s55
      %s77 = sphi 0, %s79
      %s80 = sphi 0, %s77
      %s81 = sphi 0, %s80
      %s97 = sphi 0, %s81
      %s101 = sphi 0, %s101
      %s103 = sphi 0, %s101
      %s104 = sphi 0, %s103
      %s118 = sphi 0, %s104
      %s122 = sphi 0, %s122
      %s124 = sphi 0, %s122
      %s125 = sphi 0, %s124
      %s139 = sphi 0, %s125
      %s143 = sphi 0, %s143
      %s145 = sphi 0, %s143
      %s146 = sphi 0, %s145
      %s160 = sphi 0, %s146
      %s164 = sphi 0, %s164
      %s166 = sphi 0, %s164
      %s167 = sphi 0, %s166
      %s181 = sphi 0, %s167
      %s185 = sphi 0, %s185
      %s187 = sphi 0, %s185
      %s188 = sphi 0, %s187
      %s202 = sphi 0, %s188
      %s208 = sphi 0, %s210
      %s211 = sphi 0, %s208
      %s212 = sphi 0, %s211
      %s228 = sphi 0, %s212
      %s234 = sphi 0, %s236
      %s237 = sphi 0, %s234
      %s238 = sphi 0, %s237
      %s254 = sphi 0, %s238
    $region4: #{tpu_custom_call.1} parent=1 // loop_header_branch
      %30 = sbr.rel (%p28) target = $region8
    $region5: #{tpu_custom_call.1} parent=1 // loop_body
      %s32 = ssub.s32 %s27, 1
      %s33 = ssub.s32 %s27, 2
      %s40 = sadd.s32 1, %s35
      %p41 = scmp.ge.s32.totalorder %s40, 1
      %s42 = scalar_select %p41, 0, %s40
      %s43 = sadd.s32 1, %s34
      %s44 = scalar_select %p41, %s43, %s34
      %p45 = scmp.ge.s32.totalorder %s44, 2
      %s46 = scalar_select %p45, 0, %s44
      %s47 = ssub.s32 %s34, %s46
      %s48 = ssub.s32 %s35, %s42
      %s49 = sor.u32 %s47, %s48
      %p50 = scmp.eq.s32.totalorder %s49, 0
      %s52 = sadd.s32 %s51, 1
      %s53 = scalar_select %p50, %s51, %s52
      %p56 = pneg %p50
      %p57 = scmp.eq.s32.totalorder %s27, 1
      %p58 = por %p56, %p57
      %p59 = scmp.ne.s32.totalorder %s51, %s54
      %p60 = scmp.eq.s32.totalorder %s27, 0
      %p61 = por %p59, %p60
      %p62 = scmp.ne.s32.totalorder %s51, %s54
      %p63 = scmp.eq.s32.totalorder %s32, 1
      %p64 = por %p62, %p63
      %p65 = scmp.ne.s32.totalorder %s54, %s55
      %p66 = scmp.eq.s32.totalorder %s32, 0
      %p67 = por %p65, %p66
      %p68 = scmp.ne.s32.totalorder %s54, %s55
      %p69 = scmp.eq.s32.totalorder %s33, 1
      %p70 = por %p68, %p69
      %p72 = scmp.ne.s32.totalorder %s55, %s71
      %p73 = scmp.eq.s32.totalorder %s33, 0
      %p74 = por %p72, %p73
      %s75 = ssub.s32 %s35, %s42
      %p76 = scmp.eq.s32.totalorder %s75, 0
      %s78 = sadd.s32 %s77, 1
      %s79 = scalar_select %p76, %s77, %s78
      %p82 = pneg %p76
      %p83 = scmp.eq.s32.totalorder %s27, 1
      %p84 = por %p82, %p83
      %p85 = scmp.ne.s32.totalorder %s77, %s80
      %p86 = scmp.eq.s32.totalorder %s27, 0
      %p87 = por %p85, %p86
      %p88 = scmp.ne.s32.totalorder %s77, %s80
      %p89 = scmp.eq.s32.totalorder %s32, 1
      %p90 = por %p88, %p89
      %p91 = scmp.ne.s32.totalorder %s80, %s81
      %p92 = scmp.eq.s32.totalorder %s32, 0
      %p93 = por %p91, %p92
      %p94 = scmp.ne.s32.totalorder %s80, %s81
      %p95 = scmp.eq.s32.totalorder %s33, 1
      %p96 = por %p94, %p95
      %p98 = scmp.ne.s32.totalorder %s81, %s97
      %p99 = scmp.eq.s32.totalorder %s33, 0
      %p100 = por %p98, %p99
      %s102 = sadd.s32 %s101, 1
      %p105 = scmp.eq.s32.totalorder %s27, 1
      %p106 = scmp.ne.s32.totalorder %s101, %s103
      %p107 = scmp.eq.s32.totalorder %s27, 0
      %p108 = por %p106, %p107
      %p109 = scmp.ne.s32.totalorder %s101, %s103
      %p110 = scmp.eq.s32.totalorder %s32, 1
      %p111 = por %p109, %p110
      %p112 = scmp.ne.s32.totalorder %s103, %s104
      %p113 = scmp.eq.s32.totalorder %s32, 0
      %p114 = por %p112, %p113
      %p115 = scmp.ne.s32.totalorder %s103, %s104
      %p116 = scmp.eq.s32.totalorder %s33, 1
      %p117 = por %p115, %p116
      %p119 = scmp.ne.s32.totalorder %s104, %s118
      %p120 = scmp.eq.s32.totalorder %s33, 0
      %p121 = por %p119, %p120
      %s123 = sadd.s32 %s122, 1
      %p126 = scmp.eq.s32.totalorder %s27, 1
      %p127 = scmp.ne.s32.totalorder %s122, %s124
      %p128 = scmp.eq.s32.totalorder %s27, 0
      %p129 = por %p127, %p128
      %p130 = scmp.ne.s32.totalorder %s122, %s124
      %p131 = scmp.eq.s32.totalorder %s32, 1
      %p132 = por %p130, %p131
      %p133 = scmp.ne.s32.totalorder %s124, %s125
      %p134 = scmp.eq.s32.totalorder %s32, 0
      %p135 = por %p133, %p134
      %p136 = scmp.ne.s32.totalorder %s124, %s125
      %p137 = scmp.eq.s32.totalorder %s33, 1
      %p138 = por %p136, %p137
      %p140 = scmp.ne.s32.totalorder %s125, %s139
      %p141 = scmp.eq.s32.totalorder %s33, 0
      %p142 = por %p140, %p141
      %s144 = sadd.s32 %s143, 1
      %p147 = scmp.eq.s32.totalorder %s27, 1
      %p148 = scmp.ne.s32.totalorder %s143, %s145
      %p149 = scmp.eq.s32.totalorder %s27, 0
      %p150 = por %p148, %p149
      %p151 = scmp.ne.s32.totalorder %s143, %s145
      %p152 = scmp.eq.s32.totalorder %s32, 1
      %p153 = por %p151, %p152
      %p154 = scmp.ne.s32.totalorder %s145, %s146
      %p155 = scmp.eq.s32.totalorder %s32, 0
      %p156 = por %p154, %p155
      %p157 = scmp.ne.s32.totalorder %s145, %s146
      %p158 = scmp.eq.s32.totalorder %s33, 1
      %p159 = por %p157, %p158
      %p161 = scmp.ne.s32.totalorder %s146, %s160
      %p162 = scmp.eq.s32.totalorder %s33, 0
      %p163 = por %p161, %p162
      %s165 = sadd.s32 %s164, 1
      %p168 = scmp.eq.s32.totalorder %s27, 1
      %p169 = scmp.ne.s32.totalorder %s164, %s166
      %p170 = scmp.eq.s32.totalorder %s27, 0
      %p171 = por %p169, %p170
      %p172 = scmp.ne.s32.totalorder %s164, %s166
      %p173 = scmp.eq.s32.totalorder %s32, 1
      %p174 = por %p172, %p173
      %p175 = scmp.ne.s32.totalorder %s166, %s167
      %p176 = scmp.eq.s32.totalorder %s32, 0
      %p177 = por %p175, %p176
      %p178 = scmp.ne.s32.totalorder %s166, %s167
      %p179 = scmp.eq.s32.totalorder %s33, 1
      %p180 = por %p178, %p179
      %p182 = scmp.ne.s32.totalorder %s167, %s181
      %p183 = scmp.eq.s32.totalorder %s33, 0
      %p184 = por %p182, %p183
      %s186 = sadd.s32 %s185, 1
      %p189 = scmp.eq.s32.totalorder %s27, 1
      %p190 = scmp.ne.s32.totalorder %s185, %s187
      %p191 = scmp.eq.s32.totalorder %s27, 0
      %p192 = por %p190, %p191
      %p193 = scmp.ne.s32.totalorder %s185, %s187
      %p194 = scmp.eq.s32.totalorder %s32, 1
      %p195 = por %p193, %p194
      %p196 = scmp.ne.s32.totalorder %s187, %s188
      %p197 = scmp.eq.s32.totalorder %s32, 0
      %p198 = por %p196, %p197
      %p199 = scmp.ne.s32.totalorder %s187, %s188
      %p200 = scmp.eq.s32.totalorder %s33, 1
      %p201 = por %p199, %p200
      %p203 = scmp.ne.s32.totalorder %s188, %s202
      %p204 = scmp.eq.s32.totalorder %s33, 0
      %p205 = por %p203, %p204
      %s206 = ssub.s32 %s34, %s46
      %p207 = scmp.eq.s32.totalorder %s206, 0
      %s209 = sadd.s32 %s208, 1
      %s210 = scalar_select %p207, %s208, %s209
      %p213 = pneg %p207
      %p214 = scmp.eq.s32.totalorder %s27, 1
      %p215 = por %p213, %p214
      %p216 = scmp.ne.s32.totalorder %s208, %s211
      %p217 = scmp.eq.s32.totalorder %s27, 0
      %p218 = por %p216, %p217
      %p219 = scmp.ne.s32.totalorder %s208, %s211
      %p220 = scmp.eq.s32.totalorder %s32, 1
      %p221 = por %p219, %p220
      %p222 = scmp.ne.s32.totalorder %s211, %s212
      %p223 = scmp.eq.s32.totalorder %s32, 0
      %p224 = por %p222, %p223
      %p225 = scmp.ne.s32.totalorder %s211, %s212
      %p226 = scmp.eq.s32.totalorder %s33, 1
      %p227 = por %p225, %p226
      %p229 = scmp.ne.s32.totalorder %s212, %s228
      %p230 = scmp.eq.s32.totalorder %s33, 0
      %p231 = por %p229, %p230
      %s232 = ssub.s32 %s34, %s46
      %p233 = scmp.eq.s32.totalorder %s232, 0
      %s235 = sadd.s32 %s234, 1
      %s236 = scalar_select %p233, %s234, %s235
      %p239 = pneg %p233
      %p240 = scmp.eq.s32.totalorder %s27, 1
      %p241 = por %p239, %p240
      %p242 = scmp.ne.s32.totalorder %s234, %s237
      %p243 = scmp.eq.s32.totalorder %s27, 0
      %p244 = por %p242, %p243
      %p245 = scmp.ne.s32.totalorder %s234, %s237
      %p246 = scmp.eq.s32.totalorder %s32, 1
      %p247 = por %p245, %p246
      %p248 = scmp.ne.s32.totalorder %s237, %s238
      %p249 = scmp.eq.s32.totalorder %s32, 0
      %p250 = por %p248, %p249
      %p251 = scmp.ne.s32.totalorder %s237, %s238
      %p252 = scmp.eq.s32.totalorder %s33, 1
      %p253 = por %p251, %p252
      %p255 = scmp.ne.s32.totalorder %s238, %s254
      %p256 = scmp.eq.s32.totalorder %s33, 0
      %p257 = por %p255, %p256
      %p258 = scmp.le.s32.totalorder 1, %s27
      %p259 = scmp.lt.s32.totalorder %s27, 3
      %p260 = pnand %p258, %p259
      %p261 = pneg %p260
      // Predicated region
      $region9: #{tpu_custom_call.1} parent=5 // pred_check
        _
      $region10: #{tpu_custom_call.1} parent=5 // pred_check_branch
        %263 = sbr.rel (%p260) target = $region12
      $region11: #{tpu_custom_call.1} parent=5 // pred_region
        %s264 = ssub.s32 %s27, 1
        // Predicated region
        $region13: #{tpu_custom_call.1} parent=11 // pred_check
          %p265 = pneg %p93
        $region14: #{tpu_custom_call.1} parent=11 // pred_check_branch
          %267 = sbr.rel (%p265) target = $region16
        $region15: #{tpu_custom_call.1} parent=11 // pred_region
          %269 = vsyncadd [#allocation7], 0
          %s270 = smul.addr %s37, 8
          %s271 = scalar_lea.hbm %s1, %s270
          %s272 = sshll.u32 %s271, 4
          %s273 = int_to_ptr.hbm [resolvable:$true] %s272
          %s274 = sshll.u32 [#allocation6], 4
          %s275 = int_to_ptr.vmem [resolvable:$true] %s274
          %280 = dma.hbm_to_vmem [thread:$0]  %s273, 4096, %s275, [#allocation7], 128, 128, 8
        $region16: #{tpu_custom_call.1} parent=11 // pred_fallthru
          _
        // Predicated region
        $region17: #{tpu_custom_call.1} parent=11 // pred_check
          %p281 = pneg %p114
        $region18: #{tpu_custom_call.1} parent=11 // pred_check_branch
          %283 = sbr.rel (%p281) target = $region20
        $region19: #{tpu_custom_call.1} parent=11 // pred_region
          %285 = vsyncadd [#allocation7], 0
          %s287 = sshll.u32 %s2, 4
          %s288 = int_to_ptr.hbm [resolvable:$true] %s287
          %s289 = sshll.u32 [#allocation8], 4
          %s290 = int_to_ptr.vmem [resolvable:$true] %s289
          %292 = dma.hbm_to_vmem [thread:$0]  %s288, 64, %s290, [#allocation7]
        $region20: #{tpu_custom_call.1} parent=11 // pred_fallthru
          _
        // Predicated region
        $region21: #{tpu_custom_call.1} parent=11 // pred_check
          %p293 = pneg %p135
        $region22: #{tpu_custom_call.1} parent=11 // pred_check_branch
          %295 = sbr.rel (%p293) target = $region24
        $region23: #{tpu_custom_call.1} parent=11 // pred_region
          %297 = vsyncadd [#allocation10], 0
          %s298 = sshll.u32 %s3, 4
          %s299 = int_to_ptr.hbm [resolvable:$true] %s298
          %s300 = sshll.u32 [#allocation9], 4
          %s301 = int_to_ptr.vmem [resolvable:$true] %s300
          %306 = dma.hbm_to_vmem [thread:$0]  %s299, 2048, %s301, [#allocation10], 64, 64, 4
        $region24: #{tpu_custom_call.1} parent=11 // pred_fallthru
          _
        // Predicated region
        $region25: #{tpu_custom_call.1} parent=11 // pred_check
          %p307 = pneg %p156
        $region26: #{tpu_custom_call.1} parent=11 // pred_check_branch
          %309 = sbr.rel (%p307) target = $region28
        $region27: #{tpu_custom_call.1} parent=11 // pred_region
          %311 = vsyncadd [#allocation10], 0
          %s313 = sshll.u32 %s4, 4
          %s314 = int_to_ptr.hbm [resolvable:$true] %s313
          %s315 = sshll.u32 [#allocation11], 4
          %s316 = int_to_ptr.vmem [resolvable:$true] %s315
          %318 = dma.hbm_to_vmem [thread:$0]  %s314, 64, %s316, [#allocation10]
        $region28: #{tpu_custom_call.1} parent=11 // pred_fallthru
          _
        // Predicated region
        $region29: #{tpu_custom_call.1} parent=11 // pred_check
          %p319 = pneg %p177
        $region30: #{tpu_custom_call.1} parent=11 // pred_check_branch
          %321 = sbr.rel (%p319) target = $region32
        $region31: #{tpu_custom_call.1} parent=11 // pred_region
          %323 = vsyncadd [#allocation13], 0
          %s324 = sshll.u32 %s5, 4
          %s325 = int_to_ptr.hbm [resolvable:$true] %s324
          %s326 = sshll.u32 [#allocation12], 4
          %s327 = int_to_ptr.vmem [resolvable:$true] %s326
          %332 = dma.hbm_to_vmem [thread:$0]  %s325, 1024, %s327, [#allocation13], 64, 64, 4
        $region32: #{tpu_custom_call.1} parent=11 // pred_fallthru
          _
        // Predicated region
        $region33: #{tpu_custom_call.1} parent=11 // pred_check
          %p333 = pneg %p198
        $region34: #{tpu_custom_call.1} parent=11 // pred_check_branch
          %335 = sbr.rel (%p333) target = $region36
        $region35: #{tpu_custom_call.1} parent=11 // pred_region
          _
        $region36: #{tpu_custom_call.1} parent=11 // pred_fallthru
          _
      $region12: #{tpu_custom_call.1} parent=5 // pred_fallthru
        _
      %p336 = scmp.lt.s32.totalorder %s27, 2
      // Predicated region
      $region37: #{tpu_custom_call.1} parent=5 // pred_check
        %p337 = pneg %p336
      $region38: #{tpu_custom_call.1} parent=5 // pred_check_branch
        %339 = sbr.rel (%p337) target = $region40
      $region39: #{tpu_custom_call.1} parent=5 // pred_region
        // Predicated region
        $region41: #{tpu_custom_call.1} parent=39 // pred_check
          %p340 = pneg %p61
        $region42: #{tpu_custom_call.1} parent=39 // pred_check_branch
          %342 = sbr.rel (%p340) target = $region44
        $region43: #{tpu_custom_call.1} parent=39 // pred_region
          %s343 = sand.u32 %s51, 1
          %s344 = scalar_lea.sflag [#allocation4], %s343
          %s345 = sand.u32 %s51, 1
          %s346 = smul.addr %s345, 16
          %s347 = scalar_lea.vmem [#allocation3], %s346
          %s348 = smul.u32 4, %s34
          %350 = vsyncadd %s344, 0
          %s351 = sadd.s32 %s35, %s348
          %s352 = smul.addr %s351, 4
          %s353 = scalar_lea.hbm %s0, %s352
          %s354 = sshll.u32 %s353, 4
          %s355 = int_to_ptr.hbm [resolvable:$true] %s354
          %s356 = sshll.u32 %s347, 4
          %s357 = int_to_ptr.vmem [resolvable:$true] %s356
          %362 = dma.hbm_to_vmem [thread:$0]  %s355, 256, %s357, %s344, 64, 64, 4
        $region44: #{tpu_custom_call.1} parent=39 // pred_fallthru
          _
      $region40: #{tpu_custom_call.1} parent=5 // pred_fallthru
        _
      %p363 = scmp.le.s32.totalorder 1, %s27
      %p364 = scmp.lt.s32.totalorder %s27, 3
      %p365 = pnand %p363, %p364
      %p366 = pneg %p365
      // Predicated region
      $region45: #{tpu_custom_call.1} parent=5 // pred_check
        _
      $region46: #{tpu_custom_call.1} parent=5 // pred_check_branch
        %368 = sbr.rel (%p365) target = $region48
      $region47: #{tpu_custom_call.1} parent=5 // pred_region
        %s369 = ssub.s32 %s27, 1
        %s370 = sand.u32 %s54, 1
        %s371 = scalar_lea.sflag [#allocation4], %s370
        %s372 = sand.u32 %s54, 1
        %s373 = smul.addr %s372, 16
        %s374 = scalar_lea.vmem [#allocation3], %s373
        // Predicated region
        $region49: #{tpu_custom_call.1} parent=47 // pred_check
          %p375 = pneg %p67
        $region50: #{tpu_custom_call.1} parent=47 // pred_check_branch
          %377 = sbr.rel (%p375) target = $region52
        $region51: #{tpu_custom_call.1} parent=47 // pred_region
          %379 = dma.done %s371, 256
        $region52: #{tpu_custom_call.1} parent=47 // pred_fallthru
          _
        // Predicated region
        $region53: #{tpu_custom_call.1} parent=47 // pred_check
          %p380 = pneg %p93
        $region54: #{tpu_custom_call.1} parent=47 // pred_check_branch
          %382 = sbr.rel (%p380) target = $region56
        $region55: #{tpu_custom_call.1} parent=47 // pred_region
          %384 = dma.done [#allocation7], 4096
        $region56: #{tpu_custom_call.1} parent=47 // pred_fallthru
          _
        // Predicated region
        $region57: #{tpu_custom_call.1} parent=47 // pred_check
          %p385 = pneg %p114
        $region58: #{tpu_custom_call.1} parent=47 // pred_check_branch
          %387 = sbr.rel (%p385) target = $region60
        $region59: #{tpu_custom_call.1} parent=47 // pred_region
          %389 = dma.done [#allocation7], 64
        $region60: #{tpu_custom_call.1} parent=47 // pred_fallthru
          _
        // Predicated region
        $region61: #{tpu_custom_call.1} parent=47 // pred_check
          %p390 = pneg %p135
        $region62: #{tpu_custom_call.1} parent=47 // pred_check_branch
          %392 = sbr.rel (%p390) target = $region64
        $region63: #{tpu_custom_call.1} parent=47 // pred_region
          %394 = dma.done [#allocation10], 2048
        $region64: #{tpu_custom_call.1} parent=47 // pred_fallthru
          _
        // Predicated region
        $region65: #{tpu_custom_call.1} parent=47 // pred_check
          %p395 = pneg %p156
        $region66: #{tpu_custom_call.1} parent=47 // pred_check_branch
          %397 = sbr.rel (%p395) target = $region68
        $region67: #{tpu_custom_call.1} parent=47 // pred_region
          %399 = dma.done [#allocation10], 64
        $region68: #{tpu_custom_call.1} parent=47 // pred_fallthru
          _
        // Predicated region
        $region69: #{tpu_custom_call.1} parent=47 // pred_check
          %p400 = pneg %p177
        $region70: #{tpu_custom_call.1} parent=47 // pred_check_branch
          %402 = sbr.rel (%p400) target = $region72
        $region71: #{tpu_custom_call.1} parent=47 // pred_region
          %404 = dma.done [#allocation13], 1024
        $region72: #{tpu_custom_call.1} parent=47 // pred_fallthru
          _
        %s405 = sand.u32 %s54, 1
        %s406 = scalar_lea.sflag [#allocation4], %s405
        %s407 = sand.u32 %s54, 1
        %s408 = smul.addr %s407, 16
        %s409 = scalar_lea.vmem [#allocation3], %s408
        %p410 = pneg %p67
        %p411 = pneg %p64
        %p412 = pneg %p93
        %p413 = pneg %p90
        %p414 = pneg %p114
        %p415 = pneg %p111
        %p416 = pneg %p135
        %p417 = pneg %p132
        %p418 = pneg %p156
        %p419 = pneg %p153
        %p420 = pneg %p177
        %p421 = pneg %p174
        %p422 = pneg %p198
        %p423 = pneg %p195
        %p424 = pneg %p224
        %p425 = pneg %p221
        %s426 = sand.u32 %s211, 1
        %s427 = scalar_lea.sflag [#allocation5], %s426
        %s428 = sand.u32 %s211, 1
        %s429 = smul.addr %s428, 64
        %s430 = scalar_lea.vmem [#allocation14], %s429
        %p431 = pneg %p250
        %p432 = pneg %p247
        %s433 = sand.u32 %s237, 1
        %s434 = scalar_lea.sflag [#allocation16], %s433
        %s435 = sand.u32 %s237, 1
        %s436 = smul.addr %s435, 32
        %s437 = scalar_lea.vmem [#allocation15], %s436
        %s438 = smul.u32 4, %s36
        %s439 = smul.u32 4, %s36
        %s440 = smul.u32 4, %s36
        %p441 = scmp.eq.s32.totalorder %s37, 0
        // Predicated region
        $region73: #{tpu_custom_call.1} parent=47 // pred_check
          %p442 = pneg %p441
        $region74: #{tpu_custom_call.1} parent=47 // pred_check_branch
          %444 = sbr.rel (%p442) target = $region76
        $region75: #{tpu_custom_call.1} parent=47 // pred_region
          %445 = vst [vmem:[#allocation2] sm:$0xff] 0.0
          %446 = vst [vmem:[#allocation2 + $0x8] sm:$0xff] 0.0
          %447 = vst [vmem:[#allocation2 + $0x10] sm:$0xff] 0.0
          %448 = vst [vmem:[#allocation2 + $0x18] sm:$0xff] 0.0
          %449 = vst [vmem:[#allocation2 + $0x20] sm:$0xff] 0.0
          %450 = vst [vmem:[#allocation2 + $0x28] sm:$0xff] 0.0
          %451 = vst [vmem:[#allocation2 + $0x30] sm:$0xff] 0.0
          %452 = vst [vmem:[#allocation2 + $0x38] sm:$0xff] 0.0
        $region76: #{tpu_custom_call.1} parent=47 // pred_fallthru
          _
        %v453 = vld [vmem:[#allocation6] sm:$0xff]
        %v454 = vld [vmem:[#allocation6 + $0x8] sm:$0xff]
        %v455 = vld [vmem:[#allocation6 + $0x10] sm:$0xff]
        %v456 = vld [vmem:[#allocation6 + $0x18] sm:$0xff]
        %v457 = vld [vmem:[#allocation6 + $0x20] sm:$0xff]
        %v458 = vld [vmem:[#allocation6 + $0x28] sm:$0xff]
        %v459 = vld [vmem:[#allocation6 + $0x30] sm:$0xff]
        %v460 = vld [vmem:[#allocation6 + $0x38] sm:$0xff]
        %v461 = vld [vmem:[#allocation6 + $0x40] sm:$0xff]
        %v462 = vld [vmem:[#allocation6 + $0x48] sm:$0xff]
        %v463 = vld [vmem:[#allocation6 + $0x50] sm:$0xff]
        %v464 = vld [vmem:[#allocation6 + $0x58] sm:$0xff]
        %v465 = vld [vmem:[#allocation6 + $0x60] sm:$0xff]
        %v466 = vld [vmem:[#allocation6 + $0x68] sm:$0xff]
        %v467 = vld [vmem:[#allocation6 + $0x70] sm:$0xff]
        %v468 = vld [vmem:[#allocation6 + $0x78] sm:$0xff]
        %v469 = vld [vmem:[#allocation6 + $0x80] sm:$0xff]
        %v470 = vld [vmem:[#allocation6 + $0x88] sm:$0xff]
        %v471 = vld [vmem:[#allocation6 + $0x90] sm:$0xff]
        %v472 = vld [vmem:[#allocation6 + $0x98] sm:$0xff]
        %v473 = vld [vmem:[#allocation6 + $0xa0] sm:$0xff]
        %v474 = vld [vmem:[#allocation6 + $0xa8] sm:$0xff]
        %v475 = vld [vmem:[#allocation6 + $0xb0] sm:$0xff]
        %v476 = vld [vmem:[#allocation6 + $0xb8] sm:$0xff]
        %v477 = vld [vmem:[#allocation6 + $0xc0] sm:$0xff]
        %v478 = vld [vmem:[#allocation6 + $0xc8] sm:$0xff]
        %v479 = vld [vmem:[#allocation6 + $0xd0] sm:$0xff]
        %v480 = vld [vmem:[#allocation6 + $0xd8] sm:$0xff]
        %v481 = vld [vmem:[#allocation6 + $0xe0] sm:$0xff]
        %v482 = vld [vmem:[#allocation6 + $0xe8] sm:$0xff]
        %v483 = vld [vmem:[#allocation6 + $0xf0] sm:$0xff]
        %v484 = vld [vmem:[#allocation6 + $0xf8] sm:$0xff]
        %v485 = vmul.f32 %v453, 1.442695
        %v486 = vpow.pop %v485
        %v487 = vmul.f32 %v454, 1.442695
        %v488 = vpow.pop %v487
        %v489 = vmul.f32 %v455, 1.442695
        %v490 = vpow.pop %v489
        %v491 = vmul.f32 %v456, 1.442695
        %v492 = vpow.pop %v491
        %v493 = vmul.f32 %v457, 1.442695
        %v494 = vpow.pop %v493
        %v495 = vmul.f32 %v458, 1.442695
        %v496 = vpow.pop %v495
        %v497 = vmul.f32 %v459, 1.442695
        %v498 = vpow.pop %v497
        %v499 = vmul.f32 %v460, 1.442695
        %v500 = vpow.pop %v499
        %v501 = vmul.f32 %v461, 1.442695
        %v502 = vpow.pop %v501
        %v503 = vmul.f32 %v462, 1.442695
        %v504 = vpow.pop %v503
        %v505 = vmul.f32 %v463, 1.442695
        %v506 = vpow.pop %v505
        %v507 = vmul.f32 %v464, 1.442695
        %v508 = vpow.pop %v507
        %v509 = vmul.f32 %v465, 1.442695
        %v510 = vpow.pop %v509
        %v511 = vmul.f32 %v466, 1.442695
        %v512 = vpow.pop %v511
        %v513 = vmul.f32 %v467, 1.442695
        %v514 = vpow.pop %v513
        %v515 = vmul.f32 %v468, 1.442695
        %v516 = vpow.pop %v515
        %v517 = vmul.f32 %v469, 1.442695
        %v518 = vpow.pop %v517
        %v519 = vmul.f32 %v470, 1.442695
        %v520 = vpow.pop %v519
        %v521 = vmul.f32 %v471, 1.442695
        %v522 = vpow.pop %v521
        %v523 = vmul.f32 %v472, 1.442695
        %v524 = vpow.pop %v523
        %v525 = vmul.f32 %v473, 1.442695
        %v526 = vpow.pop %v525
        %v527 = vmul.f32 %v474, 1.442695
        %v528 = vpow.pop %v527
        %v529 = vmul.f32 %v475, 1.442695
        %v530 = vpow.pop %v529
        %v531 = vmul.f32 %v476, 1.442695
        %v532 = vpow.pop %v531
        %v533 = vmul.f32 %v477, 1.442695
        %v534 = vpow.pop %v533
        %v535 = vmul.f32 %v478, 1.442695
        %v536 = vpow.pop %v535
        %v537 = vmul.f32 %v479, 1.442695
        %v538 = vpow.pop %v537
        %v539 = vmul.f32 %v480, 1.442695
        %v540 = vpow.pop %v539
        %v541 = vmul.f32 %v481, 1.442695
        %v542 = vpow.pop %v541
        %v543 = vmul.f32 %v482, 1.442695
        %v544 = vpow.pop %v543
        %v545 = vmul.f32 %v483, 1.442695
        %v546 = vpow.pop %v545
        %v547 = vmul.f32 %v484, 1.442695
        %v548 = vpow.pop %v547
        %v549 = vpack.c.bf16 %v488, %v486
        %v550 = vpack.c.bf16 %v492, %v490
        %v551 = vpack.c.bf16 %v496, %v494
        %v552 = vpack.c.bf16 %v500, %v498
        %v553 = vpack.c.bf16 %v504, %v502
        %v554 = vpack.c.bf16 %v508, %v506
        %v555 = vpack.c.bf16 %v512, %v510
        %v556 = vpack.c.bf16 %v516, %v514
        %v557 = vpack.c.bf16 %v520, %v518
        %v558 = vpack.c.bf16 %v524, %v522
        %v559 = vpack.c.bf16 %v528, %v526
        %v560 = vpack.c.bf16 %v532, %v530
        %v561 = vpack.c.bf16 %v536, %v534
        %v562 = vpack.c.bf16 %v540, %v538
        %v563 = vpack.c.bf16 %v544, %v542
        %v564 = vpack.c.bf16 %v548, %v546
        %v565 = vld [vmem:[#allocation2] sm:$0xff]
        %v566 = vld [vmem:[#allocation2 + $0x8] sm:$0xff]
        %v567 = vld [vmem:[#allocation2 + $0x10] sm:$0xff]
        %v568 = vld [vmem:[#allocation2 + $0x18] sm:$0xff]
        %v569 = vld [vmem:[#allocation2 + $0x20] sm:$0xff]
        %v570 = vld [vmem:[#allocation2 + $0x28] sm:$0xff]
        %v571 = vld [vmem:[#allocation2 + $0x30] sm:$0xff]
        %v572 = vld [vmem:[#allocation2 + $0x38] sm:$0xff]
        %v573 = vld [vmem:[%s374] sm:$0xf]
        %v574 = vld [vmem:[%s374 + $0x4] sm:$0xf]
        %v575 = vld [vmem:[%s374 + $0x8] sm:$0xf]
        %v576 = vld [vmem:[%s374 + $0xc] sm:$0xf]
        %v581 = vunpack.c.l.b16 %v573
        %v582 = vunpack.c.l.b16 %v574
        %v583 = vunpack.c.l.b16 %v575
        %v584 = vunpack.c.l.b16 %v576
        %v585 = vpack.c.b16 %v582, %v581
        %v586 = vpack.c.b16 %v584, %v583
        %589 = vmatpush.bf16.xpose.msra.mxu0 %v556
        %590 = vmatpush.bf16.xpose.msra.mxu0 %v555
        %591 = vmatpush.bf16.xpose.msra.mxu0 %v554
        %592 = vmatpush.bf16.xpose.msra.mxu0 %v553
        %593 = vmatpush.bf16.xpose.msra.mxu0 %v552
        %594 = vmatpush.bf16.xpose.msra.mxu0 %v551
        %595 = vmatpush.bf16.xpose.msra.mxu0 %v550
        %596 = vmatpush.bf16.xpose.msra.mxu0 %v549
        %597 = vmatmul.bf16.gmra.mxu0 %v585
        %v598 = vpop.f32.mrf.mxu0
        %v599 = vadd.f32 0.0, %v598
        %v600 = vpop.f32.mrf.mxu0
        %v601 = vadd.f32 0.0, %v600
        %602 = vmatmul.bf16.gmra.mxu0 %v586
        %v603 = vpop.f32.mrf.mxu0
        %v604 = vadd.f32 0.0, %v603
        %v605 = vpop.f32.mrf.mxu0
        %v606 = vadd.f32 0.0, %v605
        %607 = vdwg.mxu0
        %608 = vmatpush.bf16.xpose.msra.mxu0 %v564
        %609 = vmatpush.bf16.xpose.msra.mxu0 %v563
        %610 = vmatpush.bf16.xpose.msra.mxu0 %v562
        %611 = vmatpush.bf16.xpose.msra.mxu0 %v561
        %612 = vmatpush.bf16.xpose.msra.mxu0 %v560
        %613 = vmatpush.bf16.xpose.msra.mxu0 %v559
        %614 = vmatpush.bf16.xpose.msra.mxu0 %v558
        %615 = vmatpush.bf16.xpose.msra.mxu0 %v557
        %616 = vmatmul.bf16.gmra.mxu0 %v585
        %v617 = vpop.f32.mrf.mxu0
        %v618 = vadd.f32 0.0, %v617
        %v619 = vpop.f32.mrf.mxu0
        %v620 = vadd.f32 0.0, %v619
        %621 = vmatmul.bf16.gmra.mxu0 %v586
        %v622 = vpop.f32.mrf.mxu0
        %v623 = vadd.f32 0.0, %v622
        %v624 = vpop.f32.mrf.mxu0
        %v625 = vadd.f32 0.0, %v624
        %626 = vdwg.mxu0
        %v627 = vadd.f32 %v565, %v599
        %v628 = vadd.f32 %v566, %v618
        %v629 = vadd.f32 %v567, %v601
        %v630 = vadd.f32 %v568, %v620
        %v631 = vadd.f32 %v569, %v604
        %v632 = vadd.f32 %v570, %v623
        %v633 = vadd.f32 %v571, %v606
        %v634 = vadd.f32 %v572, %v625
        %635 = vst [vmem:[#allocation2] sm:$0xff] %v627
        %636 = vst [vmem:[#allocation2 + $0x8] sm:$0xff] %v628
        %637 = vst [vmem:[#allocation2 + $0x10] sm:$0xff] %v629
        %638 = vst [vmem:[#allocation2 + $0x18] sm:$0xff] %v630
        %639 = vst [vmem:[#allocation2 + $0x20] sm:$0xff] %v631
        %640 = vst [vmem:[#allocation2 + $0x28] sm:$0xff] %v632
        %641 = vst [vmem:[#allocation2 + $0x30] sm:$0xff] %v633
        %642 = vst [vmem:[#allocation2 + $0x38] sm:$0xff] %v634
        // Predicated region
        $region77: #{tpu_custom_call.1} parent=47 // pred_check
          %p643 = pneg %p441
        $region78: #{tpu_custom_call.1} parent=47 // pred_check_branch
          %645 = sbr.rel (%p643) target = $region80
        $region79: #{tpu_custom_call.1} parent=47 // pred_region
          %v646 = vld [vmem:[#allocation8] sm:$0xf]
          %v647 = vld [vmem:[#allocation2] sm:$0xff]
          %v648 = vld [vmem:[#allocation2 + $0x8] sm:$0xff]
          %v649 = vld [vmem:[#allocation2 + $0x10] sm:$0xff]
          %v650 = vld [vmem:[#allocation2 + $0x18] sm:$0xff]
          %v651 = vld [vmem:[#allocation2 + $0x20] sm:$0xff]
          %v652 = vld [vmem:[#allocation2 + $0x28] sm:$0xff]
          %v653 = vld [vmem:[#allocation2 + $0x30] sm:$0xff]
          %v654 = vld [vmem:[#allocation2 + $0x38] sm:$0xff]
          %v655 = vadd.f32 %v647, %v648
          %656 = vadd.xlane.f32.xlu0 %v655
          %v657 = vpop.xlane.xlu0 %656
          %v658 = vadd.f32 %v649, %v650
          %659 = vadd.xlane.f32.xlu0 %v658
          %v660 = vpop.xlane.xlu0 %659
          %v661 = vadd.f32 %v651, %v652
          %662 = vadd.xlane.f32.xlu0 %v661
          %v663 = vpop.xlane.xlu0 %662
          %v664 = vadd.f32 %v653, %v654
          %665 = vadd.xlane.f32.xlu0 %v664
          %v666 = vpop.xlane.xlu0 %665
          %v667 = vrcp.pop 256.0
          %v668 = vmul.f32 256.0, %v667
          %v669 = vsub.f32 1.0, %v668
          %v670 = vmul.f32 %v667, %v669
          %v671 = vadd.f32 %v667, %v670
          %vm672 = vweird.f32 %v667
          %v673 = vsel %vm672, %v667, %v671
          %v674 = vmul.f32 %v657, %v673
          %v675 = vmul.f32 %v660, %v673
          %v676 = vmul.f32 %v663, %v673
          %v677 = vmul.f32 %v666, %v673
          %v678 = vsub.f32 %v647, %v674
          %v679 = vsub.f32 %v648, %v674
          %v680 = vsub.f32 %v649, %v675
          %v681 = vsub.f32 %v650, %v675
          %v682 = vsub.f32 %v651, %v676
          %v683 = vsub.f32 %v652, %v676
          %v684 = vsub.f32 %v653, %v677
          %v685 = vsub.f32 %v654, %v677
          %v686 = vmul.f32 %v678, %v678
          %v687 = vmul.f32 %v679, %v679
          %v688 = vmul.f32 %v680, %v680
          %v689 = vmul.f32 %v681, %v681
          %v690 = vmul.f32 %v682, %v682
          %v691 = vmul.f32 %v683, %v683
          %v692 = vmul.f32 %v684, %v684
          %v693 = vmul.f32 %v685, %v685
          %v694 = vadd.f32 %v686, %v687
          %695 = vadd.xlane.f32.xlu0 %v694
          %v696 = vpop.xlane.xlu0 %695
          %v697 = vadd.f32 %v688, %v689
          %698 = vadd.xlane.f32.xlu0 %v697
          %v699 = vpop.xlane.xlu0 %698
          %v700 = vadd.f32 %v690, %v691
          %701 = vadd.xlane.f32.xlu0 %v700
          %v702 = vpop.xlane.xlu0 %701
          %v703 = vadd.f32 %v692, %v693
          %704 = vadd.xlane.f32.xlu0 %v703
          %v705 = vpop.xlane.xlu0 %704
          %v706 = vmul.f32 %v696, %v673
          %v707 = vmul.f32 %v699, %v673
          %v708 = vmul.f32 %v702, %v673
          %v709 = vmul.f32 %v705, %v673
          %v710 = vadd.f32 %v706, 1e-05
          %v711 = vadd.f32 %v707, 1e-05
          %v712 = vadd.f32 %v708, 1e-05
          %v713 = vadd.f32 %v709, 1e-05
          %v714 = vrsqrt.pop %v710
          %v715 = vmul.f32 %v714, %v710
          %v716 = vmul.f32 %v715, %v714
          %v717 = vmul.f32 0.5, %v716
          %v718 = vsub.f32 1.5, %v717
          %v719 = vmul.f32 %v714, %v718
          %vm720 = vweird.f32 %v710
          %vm721 = vweird.f32 %v714
          %vm722 = vmor %vm720, %vm721
          %v723 = vsel %vm722, %v714, %v719
          %v724 = vrsqrt.pop %v711
          %v725 = vmul.f32 %v724, %v711
          %v726 = vmul.f32 %v725, %v724
          %v727 = vmul.f32 0.5, %v726
          %v728 = vsub.f32 1.5, %v727
          %v729 = vmul.f32 %v724, %v728
          %vm730 = vweird.f32 %v711
          %vm731 = vweird.f32 %v724
          %vm732 = vmor %vm730, %vm731
          %v733 = vsel %vm732, %v724, %v729
          %v734 = vrsqrt.pop %v712
          %v735 = vmul.f32 %v734, %v712
          %v736 = vmul.f32 %v735, %v734
          %v737 = vmul.f32 0.5, %v736
          %v738 = vsub.f32 1.5, %v737
          %v739 = vmul.f32 %v734, %v738
          %vm740 = vweird.f32 %v712
          %vm741 = vweird.f32 %v734
          %vm742 = vmor %vm740, %vm741
          %v743 = vsel %vm742, %v734, %v739
          %v744 = vrsqrt.pop %v713
          %v745 = vmul.f32 %v744, %v713
          %v746 = vmul.f32 %v745, %v744
          %v747 = vmul.f32 0.5, %v746
          %v748 = vsub.f32 1.5, %v747
          %v749 = vmul.f32 %v744, %v748
          %vm750 = vweird.f32 %v713
          %vm751 = vweird.f32 %v744
          %vm752 = vmor %vm750, %vm751
          %v753 = vsel %vm752, %v744, %v749
          %v754 = vmul.f32 %v678, %v723
          %v755 = vmul.f32 %v679, %v723
          %v756 = vmul.f32 %v680, %v733
          %v757 = vmul.f32 %v681, %v733
          %v758 = vmul.f32 %v682, %v743
          %v759 = vmul.f32 %v683, %v743
          %v760 = vmul.f32 %v684, %v753
          %v761 = vmul.f32 %v685, %v753
          %v763 = vperm.slane %v646, 0
          %v764 = vperm.slane %v646, 2
          %v767 = vperm.slane %v763, 0
          %v768 = vperm.slane %v764, 0
          %v769 = vmul.f32 %v754, %v767
          %v770 = vmul.f32 %v755, %v768
          %v771 = vmul.f32 %v756, %v767
          %v772 = vmul.f32 %v757, %v768
          %v773 = vmul.f32 %v758, %v767
          %v774 = vmul.f32 %v759, %v768
          %v775 = vmul.f32 %v760, %v767
          %v776 = vmul.f32 %v761, %v768
          %v777 = vperm.slane %v646, 1
          %v778 = vperm.slane %v646, 3
          %v781 = vperm.slane %v777, 1
          %v782 = vperm.slane %v778, 1
          %v783 = vadd.f32 %v769, %v781
          %v784 = vadd.f32 %v770, %v782
          %v785 = vadd.f32 %v771, %v781
          %v786 = vadd.f32 %v772, %v782
          %v787 = vadd.f32 %v773, %v781
          %v788 = vadd.f32 %v774, %v782
          %v789 = vadd.f32 %v775, %v781
          %v790 = vadd.f32 %v776, %v782
          %v791 = vmax.f32 %v783, 0.0
          %v792 = vmax.f32 %v784, 0.0
          %v793 = vmax.f32 %v785, 0.0
          %v794 = vmax.f32 %v786, 0.0
          %v795 = vmax.f32 %v787, 0.0
          %v796 = vmax.f32 %v788, 0.0
          %v797 = vmax.f32 %v789, 0.0
          %v798 = vmax.f32 %v790, 0.0
          %799 = vst [vmem:[%s430] sm:$0xff] %v791
          %800 = vst [vmem:[%s430 + $0x8] sm:$0xff] %v792
          %801 = vst [vmem:[%s430 + $0x10] sm:$0xff] %v793
          %802 = vst [vmem:[%s430 + $0x18] sm:$0xff] %v794
          %803 = vst [vmem:[%s430 + $0x20] sm:$0xff] %v795
          %804 = vst [vmem:[%s430 + $0x28] sm:$0xff] %v796
          %805 = vst [vmem:[%s430 + $0x30] sm:$0xff] %v797
          %806 = vst [vmem:[%s430 + $0x38] sm:$0xff] %v798
          %v807 = vld [vmem:[#allocation11] sm:$0x7]
          %v808 = vpack.c.bf16 %v793, %v791
          %v809 = vpack.c.bf16 %v794, %v792
          %v810 = vpack.c.bf16 %v797, %v795
          %v811 = vpack.c.bf16 %v798, %v796
          %v812 = vld [vmem:[#allocation9] sm:$0xf]
          %v813 = vld [vmem:[#allocation9 + $0x4] sm:$0xf]
          %v814 = vld [vmem:[#allocation9 + $0x8] sm:$0xf]
          %v815 = vld [vmem:[#allocation9 + $0xc] sm:$0xf]
          %v816 = vld [vmem:[#allocation9 + $0x10] sm:$0xf]
          %v817 = vld [vmem:[#allocation9 + $0x14] sm:$0xf]
          %v818 = vld [vmem:[#allocation9 + $0x18] sm:$0xf]
          %v819 = vld [vmem:[#allocation9 + $0x1c] sm:$0xf]
          %v820 = vld [vmem:[#allocation9 + $0x20] sm:$0xf]
          %v821 = vld [vmem:[#allocation9 + $0x24] sm:$0xf]
          %v822 = vld [vmem:[#allocation9 + $0x28] sm:$0xf]
          %v823 = vld [vmem:[#allocation9 + $0x2c] sm:$0xf]
          %v824 = vld [vmem:[#allocation9 + $0x30] sm:$0xf]
          %v825 = vld [vmem:[#allocation9 + $0x34] sm:$0xf]
          %v826 = vld [vmem:[#allocation9 + $0x38] sm:$0xf]
          %v827 = vld [vmem:[#allocation9 + $0x3c] sm:$0xf]
          %v828 = vld [vmem:[#allocation9 + $0x40] sm:$0xf]
          %v829 = vld [vmem:[#allocation9 + $0x44] sm:$0xf]
          %v830 = vld [vmem:[#allocation9 + $0x48] sm:$0xf]
          %v831 = vld [vmem:[#allocation9 + $0x4c] sm:$0xf]
          %v832 = vld [vmem:[#allocation9 + $0x50] sm:$0xf]
          %v833 = vld [vmem:[#allocation9 + $0x54] sm:$0xf]
          %v834 = vld [vmem:[#allocation9 + $0x58] sm:$0xf]
          %v835 = vld [vmem:[#allocation9 + $0x5c] sm:$0xf]
          %v836 = vld [vmem:[#allocation9 + $0x60] sm:$0xf]
          %v837 = vld [vmem:[#allocation9 + $0x64] sm:$0xf]
          %v838 = vld [vmem:[#allocation9 + $0x68] sm:$0xf]
          %v839 = vld [vmem:[#allocation9 + $0x6c] sm:$0xf]
          %v840 = vld [vmem:[#allocation9 + $0x70] sm:$0xf]
          %v841 = vld [vmem:[#allocation9 + $0x74] sm:$0xf]
          %v842 = vld [vmem:[#allocation9 + $0x78] sm:$0xf]
          %v843 = vld [vmem:[#allocation9 + $0x7c] sm:$0xf]
          %v844 = vperm.slane %v807, 0
          %v877 = vunpack.c.l.b16 %v812
          %v878 = vunpack.c.l.b16 %v813
          %v879 = vunpack.c.l.b16 %v814
          %v880 = vunpack.c.l.b16 %v815
          %v881 = vunpack.c.l.b16 %v816
          %v882 = vunpack.c.l.b16 %v817
          %v883 = vunpack.c.l.b16 %v818
          %v884 = vunpack.c.l.b16 %v819
          %v885 = vunpack.c.l.b16 %v820
          %v886 = vunpack.c.l.b16 %v821
          %v887 = vunpack.c.l.b16 %v822
          %v888 = vunpack.c.l.b16 %v823
          %v889 = vunpack.c.l.b16 %v824
          %v890 = vunpack.c.l.b16 %v825
          %v891 = vunpack.c.l.b16 %v826
          %v892 = vunpack.c.l.b16 %v827
          %v893 = vunpack.c.l.b16 %v828
          %v894 = vunpack.c.l.b16 %v829
          %v895 = vunpack.c.l.b16 %v830
          %v896 = vunpack.c.l.b16 %v831
          %v897 = vunpack.c.l.b16 %v832
          %v898 = vunpack.c.l.b16 %v833
          %v899 = vunpack.c.l.b16 %v834
          %v900 = vunpack.c.l.b16 %v835
          %v901 = vunpack.c.l.b16 %v836
          %v902 = vunpack.c.l.b16 %v837
          %v903 = vunpack.c.l.b16 %v838
          %v904 = vunpack.c.l.b16 %v839
          %v905 = vunpack.c.l.b16 %v840
          %v906 = vunpack.c.l.b16 %v841
          %v907 = vunpack.c.l.b16 %v842
          %v908 = vunpack.c.l.b16 %v843
          %v909 = vpack.c.b16 %v878, %v877
          %v910 = vpack.c.b16 %v880, %v879
          %v911 = vpack.c.b16 %v882, %v881
          %v912 = vpack.c.b16 %v884, %v883
          %v913 = vpack.c.b16 %v886, %v885
          %v914 = vpack.c.b16 %v888, %v887
          %v915 = vpack.c.b16 %v890, %v889
          %v916 = vpack.c.b16 %v892, %v891
          %v917 = vpack.c.b16 %v894, %v893
          %v918 = vpack.c.b16 %v896, %v895
          %v919 = vpack.c.b16 %v898, %v897
          %v920 = vpack.c.b16 %v900, %v899
          %v921 = vpack.c.b16 %v902, %v901
          %v922 = vpack.c.b16 %v904, %v903
          %v923 = vpack.c.b16 %v906, %v905
          %v924 = vpack.c.b16 %v908, %v907
          %941 = vmatpush.bf16.msra.mxu0 %v916
          %942 = vmatpush.bf16.msra.mxu0 %v915
          %943 = vmatpush.bf16.msra.mxu0 %v914
          %944 = vmatpush.bf16.msra.mxu0 %v913
          %945 = vmatpush.bf16.msra.mxu0 %v912
          %946 = vmatpush.bf16.msra.mxu0 %v911
          %947 = vmatpush.bf16.msra.mxu0 %v910
          %948 = vmatpush.bf16.msra.mxu0 %v909
          %949 = vmatmul.bf16.gmra.mxu0 %v808
          %v950 = vpop.f32.mrf.mxu0
          %v951 = vadd.f32 %v844, %v950
          %v952 = vpop.f32.mrf.mxu0
          %v953 = vadd.f32 %v844, %v952
          %954 = vmatmul.bf16.gmra.mxu0 %v810
          %v955 = vpop.f32.mrf.mxu0
          %v956 = vadd.f32 %v844, %v955
          %v957 = vpop.f32.mrf.mxu0
          %v958 = vadd.f32 %v844, %v957
          %959 = vdwg.mxu0
          %960 = vmatpush.bf16.msra.mxu0 %v924
          %961 = vmatpush.bf16.msra.mxu0 %v923
          %962 = vmatpush.bf16.msra.mxu0 %v922
          %963 = vmatpush.bf16.msra.mxu0 %v921
          %964 = vmatpush.bf16.msra.mxu0 %v920
          %965 = vmatpush.bf16.msra.mxu0 %v919
          %966 = vmatpush.bf16.msra.mxu0 %v918
          %967 = vmatpush.bf16.msra.mxu0 %v917
          %968 = vmatmul.bf16.gmra.mxu0 %v809
          %v969 = vpop.f32.mrf.mxu0
          %v970 = vadd.f32 %v951, %v969
          %v971 = vpop.f32.mrf.mxu0
          %v972 = vadd.f32 %v953, %v971
          %973 = vmatmul.bf16.gmra.mxu0 %v811
          %v974 = vpop.f32.mrf.mxu0
          %v975 = vadd.f32 %v956, %v974
          %v976 = vpop.f32.mrf.mxu0
          %v977 = vadd.f32 %v958, %v976
          %978 = vdwg.mxu0
          %979 = vadd.xlane.f32.xlu0 %v970
          %v980 = vpop.xlane.xlu0 %979
          %981 = vadd.xlane.f32.xlu0 %v972
          %v982 = vpop.xlane.xlu0 %981
          %983 = vadd.xlane.f32.xlu0 %v975
          %v984 = vpop.xlane.xlu0 %983
          %985 = vadd.xlane.f32.xlu0 %v977
          %v986 = vpop.xlane.xlu0 %985
          %v987 = vrcp.pop 128.0
          %v988 = vmul.f32 128.0, %v987
          %v989 = vsub.f32 1.0, %v988
          %v990 = vmul.f32 %v987, %v989
          %v991 = vadd.f32 %v987, %v990
          %vm992 = vweird.f32 %v987
          %v993 = vsel %vm992, %v987, %v991
          %v994 = vmul.f32 %v980, %v993
          %v995 = vmul.f32 %v982, %v993
          %v996 = vmul.f32 %v984, %v993
          %v997 = vmul.f32 %v986, %v993
          %v998 = vsub.f32 %v970, %v994
          %v999 = vsub.f32 %v972, %v995
          %v1000 = vsub.f32 %v975, %v996
          %v1001 = vsub.f32 %v977, %v997
          %v1002 = vmul.f32 %v998, %v998
          %v1003 = vmul.f32 %v999, %v999
          %v1004 = vmul.f32 %v1000, %v1000
          %v1005 = vmul.f32 %v1001, %v1001
          %1006 = vadd.xlane.f32.xlu0 %v1002
          %v1007 = vpop.xlane.xlu0 %1006
          %1008 = vadd.xlane.f32.xlu0 %v1003
          %v1009 = vpop.xlane.xlu0 %1008
          %1010 = vadd.xlane.f32.xlu0 %v1004
          %v1011 = vpop.xlane.xlu0 %1010
          %1012 = vadd.xlane.f32.xlu0 %v1005
          %v1013 = vpop.xlane.xlu0 %1012
          %v1014 = vmul.f32 %v1007, %v993
          %v1015 = vmul.f32 %v1009, %v993
          %v1016 = vmul.f32 %v1011, %v993
          %v1017 = vmul.f32 %v1013, %v993
          %v1018 = vadd.f32 %v1014, 1e-05
          %v1019 = vadd.f32 %v1015, 1e-05
          %v1020 = vadd.f32 %v1016, 1e-05
          %v1021 = vadd.f32 %v1017, 1e-05
          %v1022 = vrsqrt.pop %v1018
          %v1023 = vmul.f32 %v1022, %v1018
          %v1024 = vmul.f32 %v1023, %v1022
          %v1025 = vmul.f32 0.5, %v1024
          %v1026 = vsub.f32 1.5, %v1025
          %v1027 = vmul.f32 %v1022, %v1026
          %vm1028 = vweird.f32 %v1018
          %vm1029 = vweird.f32 %v1022
          %vm1030 = vmor %vm1028, %vm1029
          %v1031 = vsel %vm1030, %v1022, %v1027
          %v1032 = vrsqrt.pop %v1019
          %v1033 = vmul.f32 %v1032, %v1019
          %v1034 = vmul.f32 %v1033, %v1032
          %v1035 = vmul.f32 0.5, %v1034
          %v1036 = vsub.f32 1.5, %v1035
          %v1037 = vmul.f32 %v1032, %v1036
          %vm1038 = vweird.f32 %v1019
          %vm1039 = vweird.f32 %v1032
          %vm1040 = vmor %vm1038, %vm1039
          %v1041 = vsel %vm1040, %v1032, %v1037
          %v1042 = vrsqrt.pop %v1020
          %v1043 = vmul.f32 %v1042, %v1020
          %v1044 = vmul.f32 %v1043, %v1042
          %v1045 = vmul.f32 0.5, %v1044
          %v1046 = vsub.f32 1.5, %v1045
          %v1047 = vmul.f32 %v1042, %v1046
          %vm1048 = vweird.f32 %v1020
          %vm1049 = vweird.f32 %v1042
          %vm1050 = vmor %vm1048, %vm1049
          %v1051 = vsel %vm1050, %v1042, %v1047
          %v1052 = vrsqrt.pop %v1021
          %v1053 = vmul.f32 %v1052, %v1021
          %v1054 = vmul.f32 %v1053, %v1052
          %v1055 = vmul.f32 0.5, %v1054
          %v1056 = vsub.f32 1.5, %v1055
          %v1057 = vmul.f32 %v1052, %v1056
          %vm1058 = vweird.f32 %v1021
          %vm1059 = vweird.f32 %v1052
          %vm1060 = vmor %vm1058, %vm1059
          %v1061 = vsel %vm1060, %v1052, %v1057
          %v1062 = vmul.f32 %v998, %v1031
          %v1063 = vmul.f32 %v999, %v1041
          %v1064 = vmul.f32 %v1000, %v1051
          %v1065 = vmul.f32 %v1001, %v1061
          %v1066 = vperm.slane %v807, 1
          %v1067 = vmul.f32 %v1062, %v1066
          %v1068 = vmul.f32 %v1063, %v1066
          %v1069 = vmul.f32 %v1064, %v1066
          %v1070 = vmul.f32 %v1065, %v1066
          %v1071 = vperm.slane %v807, 2
          %v1072 = vadd.f32 %v1067, %v1071
          %v1073 = vadd.f32 %v1068, %v1071
          %v1074 = vadd.f32 %v1069, %v1071
          %v1075 = vadd.f32 %v1070, %v1071
          %v1076 = vmax.f32 %v1072, 0.0
          %v1077 = vmax.f32 %v1073, 0.0
          %v1078 = vmax.f32 %v1074, 0.0
          %v1079 = vmax.f32 %v1075, 0.0
          %v1080 = vld [vmem:[%s6] sm:$0x7]
          %v1081 = vpack.c.bf16 %v1077, %v1076
          %v1082 = vpack.c.bf16 %v1079, %v1078
          %v1083 = vld [vmem:[#allocation12] sm:$0xf]
          %v1084 = vld [vmem:[#allocation12 + $0x4] sm:$0xf]
          %v1085 = vld [vmem:[#allocation12 + $0x8] sm:$0xf]
          %v1086 = vld [vmem:[#allocation12 + $0xc] sm:$0xf]
          %v1087 = vld [vmem:[#allocation12 + $0x10] sm:$0xf]
          %v1088 = vld [vmem:[#allocation12 + $0x14] sm:$0xf]
          %v1089 = vld [vmem:[#allocation12 + $0x18] sm:$0xf]
          %v1090 = vld [vmem:[#allocation12 + $0x1c] sm:$0xf]
          %v1091 = vld [vmem:[#allocation12 + $0x20] sm:$0xf]
          %v1092 = vld [vmem:[#allocation12 + $0x24] sm:$0xf]
          %v1093 = vld [vmem:[#allocation12 + $0x28] sm:$0xf]
          %v1094 = vld [vmem:[#allocation12 + $0x2c] sm:$0xf]
          %v1095 = vld [vmem:[#allocation12 + $0x30] sm:$0xf]
          %v1096 = vld [vmem:[#allocation12 + $0x34] sm:$0xf]
          %v1097 = vld [vmem:[#allocation12 + $0x38] sm:$0xf]
          %v1098 = vld [vmem:[#allocation12 + $0x3c] sm:$0xf]
          %v1099 = vperm.slane %v1080, 0
          %v1116 = vunpack.c.l.b16 %v1083
          %v1117 = vunpack.c.l.b16 %v1084
          %v1118 = vunpack.c.l.b16 %v1085
          %v1119 = vunpack.c.l.b16 %v1086
          %v1120 = vunpack.c.l.b16 %v1087
          %v1121 = vunpack.c.l.b16 %v1088
          %v1122 = vunpack.c.l.b16 %v1089
          %v1123 = vunpack.c.l.b16 %v1090
          %v1124 = vunpack.c.l.b16 %v1091
          %v1125 = vunpack.c.l.b16 %v1092
          %v1126 = vunpack.c.l.b16 %v1093
          %v1127 = vunpack.c.l.b16 %v1094
          %v1128 = vunpack.c.l.b16 %v1095
          %v1129 = vunpack.c.l.b16 %v1096
          %v1130 = vunpack.c.l.b16 %v1097
          %v1131 = vunpack.c.l.b16 %v1098
          %v1132 = vpack.c.b16 %v1117, %v1116
          %v1133 = vpack.c.b16 %v1119, %v1118
          %v1134 = vpack.c.b16 %v1121, %v1120
          %v1135 = vpack.c.b16 %v1123, %v1122
          %v1136 = vpack.c.b16 %v1125, %v1124
          %v1137 = vpack.c.b16 %v1127, %v1126
          %v1138 = vpack.c.b16 %v1129, %v1128
          %v1139 = vpack.c.b16 %v1131, %v1130
          %1148 = vmatpush.bf16.msra.mxu0 %v1139
          %1149 = vmatpush.bf16.msra.mxu0 %v1138
          %1150 = vmatpush.bf16.msra.mxu0 %v1137
          %1151 = vmatpush.bf16.msra.mxu0 %v1136
          %1152 = vmatpush.bf16.msra.mxu0 %v1135
          %1153 = vmatpush.bf16.msra.mxu0 %v1134
          %1154 = vmatpush.bf16.msra.mxu0 %v1133
          %1155 = vmatpush.bf16.msra.mxu0 %v1132
          %1156 = vmatmul.bf16.gmra.mxu0 %v1081
          %v1157 = vpop.f32.mrf.mxu0
          %v1158 = vadd.f32 %v1099, %v1157
          %v1159 = vpop.f32.mrf.mxu0
          %v1160 = vadd.f32 %v1099, %v1159
          %1161 = vmatmul.bf16.gmra.mxu0 %v1082
          %v1162 = vpop.f32.mrf.mxu0
          %v1163 = vadd.f32 %v1099, %v1162
          %v1164 = vpop.f32.mrf.mxu0
          %v1165 = vadd.f32 %v1099, %v1164
          %1166 = vdwg.mxu0
          %v1167 = vlaneseq
          %v1168 = vand.u32 %v1167, 127
          %vm1169 = vcmp.lt.s32.totalorder %v1168, 10
          %v1170 = vsel %vm1169, %v1158, 0.0
          %v1171 = vsel %vm1169, %v1160, 0.0
          %v1172 = vsel %vm1169, %v1163, 0.0
          %v1173 = vsel %vm1169, %v1165, 0.0
          %1174 = vadd.xlane.f32.xlu0 %v1170
          %v1175 = vpop.xlane.xlu0 %1174
          %1176 = vadd.xlane.f32.xlu0 %v1171
          %v1177 = vpop.xlane.xlu0 %1176
          %1178 = vadd.xlane.f32.xlu0 %v1172
          %v1179 = vpop.xlane.xlu0 %1178
          %1180 = vadd.xlane.f32.xlu0 %v1173
          %v1181 = vpop.xlane.xlu0 %1180
          %v1182 = vrcp.pop 10.0
          %v1183 = vmul.f32 10.0, %v1182
          %v1184 = vsub.f32 1.0, %v1183
          %v1185 = vmul.f32 %v1182, %v1184
          %v1186 = vadd.f32 %v1182, %v1185
          %vm1187 = vweird.f32 %v1182
          %v1188 = vsel %vm1187, %v1182, %v1186
          %v1189 = vmul.f32 %v1175, %v1188
          %v1190 = vmul.f32 %v1177, %v1188
          %v1191 = vmul.f32 %v1179, %v1188
          %v1192 = vmul.f32 %v1181, %v1188
          %v1193 = vsub.f32 %v1158, %v1189
          %v1194 = vsub.f32 %v1160, %v1190
          %v1195 = vsub.f32 %v1163, %v1191
          %v1196 = vsub.f32 %v1165, %v1192
          %v1197 = vsel %vm1169, %v1193, 0.0
          %v1198 = vsel %vm1169, %v1194, 0.0
          %v1199 = vsel %vm1169, %v1195, 0.0
          %v1200 = vsel %vm1169, %v1196, 0.0
          %v1201 = vmul.f32 %v1197, %v1197
          %v1202 = vmul.f32 %v1198, %v1198
          %v1203 = vmul.f32 %v1199, %v1199
          %v1204 = vmul.f32 %v1200, %v1200
          %1205 = vadd.xlane.f32.xlu0 %v1201
          %v1206 = vpop.xlane.xlu0 %1205
          %1207 = vadd.xlane.f32.xlu0 %v1202
          %v1208 = vpop.xlane.xlu0 %1207
          %1209 = vadd.xlane.f32.xlu0 %v1203
          %v1210 = vpop.xlane.xlu0 %1209
          %1211 = vadd.xlane.f32.xlu0 %v1204
          %v1212 = vpop.xlane.xlu0 %1211
          %v1213 = vmul.f32 %v1206, %v1188
          %v1214 = vmul.f32 %v1208, %v1188
          %v1215 = vmul.f32 %v1210, %v1188
          %v1216 = vmul.f32 %v1212, %v1188
          %v1217 = vadd.f32 %v1213, 1e-05
          %v1218 = vadd.f32 %v1214, 1e-05
          %v1219 = vadd.f32 %v1215, 1e-05
          %v1220 = vadd.f32 %v1216, 1e-05
          %v1221 = vrsqrt.pop %v1217
          %v1222 = vmul.f32 %v1221, %v1217
          %v1223 = vmul.f32 %v1222, %v1221
          %v1224 = vmul.f32 0.5, %v1223
          %v1225 = vsub.f32 1.5, %v1224
          %v1226 = vmul.f32 %v1221, %v1225
          %vm1227 = vweird.f32 %v1217
          %vm1228 = vweird.f32 %v1221
          %vm1229 = vmor %vm1227, %vm1228
          %v1230 = vsel %vm1229, %v1221, %v1226
          %v1231 = vrsqrt.pop %v1218
          %v1232 = vmul.f32 %v1231, %v1218
          %v1233 = vmul.f32 %v1232, %v1231
          %v1234 = vmul.f32 0.5, %v1233
          %v1235 = vsub.f32 1.5, %v1234
          %v1236 = vmul.f32 %v1231, %v1235
          %vm1237 = vweird.f32 %v1218
          %vm1238 = vweird.f32 %v1231
          %vm1239 = vmor %vm1237, %vm1238
          %v1240 = vsel %vm1239, %v1231, %v1236
          %v1241 = vrsqrt.pop %v1219
          %v1242 = vmul.f32 %v1241, %v1219
          %v1243 = vmul.f32 %v1242, %v1241
          %v1244 = vmul.f32 0.5, %v1243
          %v1245 = vsub.f32 1.5, %v1244
          %v1246 = vmul.f32 %v1241, %v1245
          %vm1247 = vweird.f32 %v1219
          %vm1248 = vweird.f32 %v1241
          %vm1249 = vmor %vm1247, %vm1248
          %v1250 = vsel %vm1249, %v1241, %v1246
          %v1251 = vrsqrt.pop %v1220
          %v1252 = vmul.f32 %v1251, %v1220
          %v1253 = vmul.f32 %v1252, %v1251
          %v1254 = vmul.f32 0.5, %v1253
          %v1255 = vsub.f32 1.5, %v1254
          %v1256 = vmul.f32 %v1251, %v1255
          %vm1257 = vweird.f32 %v1220
          %vm1258 = vweird.f32 %v1251
          %vm1259 = vmor %vm1257, %vm1258
          %v1260 = vsel %vm1259, %v1251, %v1256
          %v1261 = vmul.f32 %v1193, %v1230
          %v1262 = vmul.f32 %v1194, %v1240
          %v1263 = vmul.f32 %v1195, %v1250
          %v1264 = vmul.f32 %v1196, %v1260
          %v1265 = vperm.slane %v1080, 1
          %v1266 = vmul.f32 %v1261, %v1265
          %v1267 = vmul.f32 %v1262, %v1265
          %v1268 = vmul.f32 %v1263, %v1265
          %v1269 = vmul.f32 %v1264, %v1265
          %v1270 = vperm.slane %v1080, 2
          %v1271 = vadd.f32 %v1266, %v1270
          %v1272 = vadd.f32 %v1267, %v1270
          %v1273 = vadd.f32 %v1268, %v1270
          %v1274 = vadd.f32 %v1269, %v1270
          %v1275 = vmax.f32 %v1271, 0.0
          %v1276 = vmax.f32 %v1272, 0.0
          %v1277 = vmax.f32 %v1273, 0.0
          %v1278 = vmax.f32 %v1274, 0.0
          %1279 = vst [vmem:[%s437] sm:$0xff] %v1275
          %1280 = vst [vmem:[%s437 + $0x8] sm:$0xff] %v1276
          %1281 = vst [vmem:[%s437 + $0x10] sm:$0xff] %v1277
          %1282 = vst [vmem:[%s437 + $0x18] sm:$0xff] %v1278
        $region80: #{tpu_custom_call.1} parent=47 // pred_fallthru
          _
        %s1283 = sand.u32 %s211, 1
        %s1284 = scalar_lea.sflag [#allocation5], %s1283
        %s1285 = sand.u32 %s211, 1
        %s1286 = smul.addr %s1285, 64
        %s1287 = scalar_lea.vmem [#allocation14], %s1286
        %s1288 = sand.u32 %s237, 1
        %s1289 = scalar_lea.sflag [#allocation16], %s1288
        %s1290 = sand.u32 %s237, 1
        %s1291 = smul.addr %s1290, 32
        %s1292 = scalar_lea.vmem [#allocation15], %s1291
        // Predicated region
        $region81: #{tpu_custom_call.1} parent=47 // pred_check
          %p1293 = pneg %p221
        $region82: #{tpu_custom_call.1} parent=47 // pred_check_branch
          %1295 = sbr.rel (%p1293) target = $region84
        $region83: #{tpu_custom_call.1} parent=47 // pred_region
          %s1296 = smul.u32 4, %s36
          %1298 = vsyncadd %s1284, 0
          %s1299 = smul.addr %s1296, 2
          %s1300 = smul.addr %s1299, 8
          %s1301 = scalar_lea.hbm %s7, %s1300
          %s1302 = sshll.u32 %s1287, 4
          %s1303 = int_to_ptr.vmem [resolvable:$true] %s1302
          %s1304 = sshll.u32 %s1301, 4
          %s1305 = int_to_ptr.hbm [resolvable:$true] %s1304
          %1310 = dma.vmem_to_hbm [thread:$0]  %s1303, 1024, %s1305, %s1284, 256, 256, 16
        $region84: #{tpu_custom_call.1} parent=47 // pred_fallthru
          _
        // Predicated region
        $region85: #{tpu_custom_call.1} parent=47 // pred_check
          %p1311 = pneg %p247
        $region86: #{tpu_custom_call.1} parent=47 // pred_check_branch
          %1313 = sbr.rel (%p1311) target = $region88
        $region87: #{tpu_custom_call.1} parent=47 // pred_region
          %s1314 = smul.u32 4, %s36
          %1316 = vsyncadd %s1289, 0
          %s1317 = smul.addr %s1314, 8
          %s1318 = scalar_lea.hbm %s8, %s1317
          %s1319 = sshll.u32 %s1292, 4
          %s1320 = int_to_ptr.vmem [resolvable:$true] %s1319
          %s1321 = sshll.u32 %s1318, 4
          %s1322 = int_to_ptr.hbm [resolvable:$true] %s1321
          %1327 = dma.vmem_to_hbm [thread:$0]  %s1320, 512, %s1322, %s1289, 128, 128, 8
        $region88: #{tpu_custom_call.1} parent=47 // pred_fallthru
          _
      $region48: #{tpu_custom_call.1} parent=5 // pred_fallthru
        _
      %p1328 = scmp.le.s32.totalorder 2, %s27
      // Predicated region
      $region89: #{tpu_custom_call.1} parent=5 // pred_check
        %p1329 = pneg %p1328
      $region90: #{tpu_custom_call.1} parent=5 // pred_check_branch
        %1331 = sbr.rel (%p1329) target = $region92
      $region91: #{tpu_custom_call.1} parent=5 // pred_region
        %s1332 = ssub.s32 %s27, 2
        // Predicated region
        $region93: #{tpu_custom_call.1} parent=91 // pred_check
          %p1333 = pneg %p227
        $region94: #{tpu_custom_call.1} parent=91 // pred_check_branch
          %1335 = sbr.rel (%p1333) target = $region96
        $region95: #{tpu_custom_call.1} parent=91 // pred_region
          %s1336 = sand.u32 %s212, 1
          %s1337 = scalar_lea.sflag [#allocation5], %s1336
          %s1338 = sand.u32 %s212, 1
          %s1339 = smul.addr %s1338, 64
          %s1340 = scalar_lea.vmem [#allocation14], %s1339
          %1342 = dma.done %s1337, 1024
        $region96: #{tpu_custom_call.1} parent=91 // pred_fallthru
          _
        // Predicated region
        $region97: #{tpu_custom_call.1} parent=91 // pred_check
          %p1343 = pneg %p253
        $region98: #{tpu_custom_call.1} parent=91 // pred_check_branch
          %1345 = sbr.rel (%p1343) target = $region100
        $region99: #{tpu_custom_call.1} parent=91 // pred_region
          %s1346 = sand.u32 %s238, 1
          %s1347 = scalar_lea.sflag [#allocation16], %s1346
          %s1348 = sand.u32 %s238, 1
          %s1349 = smul.addr %s1348, 32
          %s1350 = scalar_lea.vmem [#allocation15], %s1349
          %1352 = dma.done %s1347, 512
        $region100: #{tpu_custom_call.1} parent=91 // pred_fallthru
          _
      $region92: #{tpu_custom_call.1} parent=5 // pred_fallthru
        _
    $region6: #{tpu_custom_call.1} parent=1 // loop_footer
      %s31 = sadd.s32 1, %s27
    $region7: #{tpu_custom_call.1} parent=1 // loop_footer_branch
      %26 = sbr.rel target = $region3
    $region8: #{tpu_custom_call.1} parent=1 // loop_exit
      _
    %1353 = vsyncpa [#allocation4], 1
    %s1354 = scalar_lea.sflag [#allocation4], 1
    %1355 = vsyncpa %s1354, 1
    %1356 = vsyncpa [#allocation7], 1
    %1357 = vsyncpa [#allocation10], 1
    %1358 = vsyncpa [#allocation13], 1
    %1359 = vsyncpa [#allocation5], 1
    %s1360 = scalar_lea.sflag [#allocation5], 1
    %1361 = vsyncpa %s1360, 1
    %1362 = vsyncpa [#allocation16], 1
    %s1363 = scalar_lea.sflag [#allocation16], 1
    %1364 = vsyncpa %s1363, 1

</llo_original>
